<compile_context>
chip_gen: v7x
topology: tpu7x:2x2x1
jax: 0.10.0
libtpu: 0.0.40
codegen_flags: <defaults>
</compile_context>

<pallas_src>
import math

import jax
import jax.numpy as jnp
from jax.experimental import pallas as pl
from jax.experimental.pallas import tpu as pltpu


_LANE = 128


def _round_up(x, m):
    return ((x + m - 1) // m) * m


def _choose_tile_b(batch, max_tile=2048, min_grid=2):
    """Lane-aligned batch tile; prefer >=2 grid steps when there's enough work."""
    b_lane = _round_up(max(batch, 1), _LANE)
    n = pl.cdiv(b_lane, max_tile)
    if n < min_grid and b_lane >= min_grid * _LANE:
        n = min_grid                      # give both v7x TensorCores a grid step
    tile = _round_up(pl.cdiv(b_lane, n), _LANE)
    n = pl.cdiv(b_lane, tile)
    return tile, tile * n, n


# ---------------------------------------------------------------------------
# Fused kernel: (obs @ W1_obs) once per row, then per-action
#   relu(+emb_tab[a]) -> Linear+ReLU -> Linear+ReLU -> VPU dot with w4 row.
# One grid step processes TILE_B observation rows; weights stay VMEM-resident.
# ---------------------------------------------------------------------------
def _dqn_kernel(obs_ref, emb_tab_ref, w1o_ref, w2_ref, b2_ref, w3_ref, b3_ref,
                w4_ref, b4_ref, out_ref):
    # obs_ref:     (TILE_B, obs_size) bf16    -- batch tile
    # emb_tab_ref: (A, F)             f32     -- per-action layer-1 bias (BN+b1 folded)
    # w1o_ref:     (obs_size, F)      bf16
    # w2/w3:       (F, F)             bf16;   b2/b3: (1, F) f32
    # w4_ref:      (1, F)             f32;    b4_ref: (1,) f32 in SMEM
    # out_ref:     (A, TILE_B)        f32     -- lane-dense q rows
    obs_proj = jnp.dot(obs_ref[...], w1o_ref[...],
                       preferred_element_type=jnp.float32)           # (TILE_B, F)
    w2 = w2_ref[...]
    b2 = b2_ref[...]
    w3 = w3_ref[...]
    b3 = b3_ref[...]
    w4 = w4_ref[...]
    b4 = b4_ref[0]
    n_actions = emb_tab_ref.shape[0]
    for a in range(n_actions):            # static unroll; n_actions is small
        h = jnp.maximum(obs_proj + emb_tab_ref[a, :], 0.0)           # layer 1
        h = jnp.dot(h.astype(w2.dtype), w2,
                    preferred_element_type=jnp.float32) + b2         # layer 2
        h = jnp.maximum(h, 0.0)
        h = jnp.dot(h.astype(w3.dtype), w3,
                    preferred_element_type=jnp.float32) + b3         # layer 3
        h = jnp.maximum(h, 0.0)
        q = jnp.sum(h * w4, axis=-1) + b4                            # layer 4 (VPU+XLU)
        out_ref[a, :] = q.astype(out_ref.dtype)


def dqn_forward_pallas(obs, action_emb, bn_gamma, bn_beta, bn_mean, bn_var, eps,
                       w1, b1, w2, b2, w3, b3, w4, b4, *, max_tile_b=2048):
    """obs [B, obs_size] -> q [B, n_actions] (eval-mode BN folded into layer 1)."""
    batch, obs_size = obs.shape
    n_actions = action_emb.shape[0]
    fc = w1.shape[1]

    # ---- fold eval-mode BatchNorm into layer 1 (exact in real arithmetic) ----
    s = bn_gamma / jnp.sqrt(bn_var + eps)                  # (D_in,)
    t = bn_beta - bn_mean * s                              # (D_in,)
    w1s = s[:, None] * w1                                  # (D_in, F)
    const1 = t @ w1 + b1.reshape(-1)                       # (F,)
    w1_obs = w1s[:obs_size].astype(jnp.bfloat16)           # (obs_size, F) bf16
    # Per-action layer-1 contribution: tiny (A, F) table precomputed once.
    emb_tab = (action_emb @ w1s[obs_size:] + const1).astype(jnp.float32)

    tile_b, b_pad, n_tiles = _choose_tile_b(batch, max_tile_b)
    obs_bf = obs.astype(jnp.bfloat16)
    if b_pad != batch:
        obs_bf = jnp.pad(obs_bf, ((0, b_pad - batch), (0, 0)))

    w2b = w2.astype(jnp.bfloat16)
    w3b = w3.astype(jnp.bfloat16)
    b2f = b2.reshape(1, fc).astype(jnp.float32)
    b3f = b3.reshape(1, fc).astype(jnp.float32)
    w4row = w4.reshape(1, fc).astype(jnp.float32)
    b4s = b4.reshape(-1).astype(jnp.float32)               # (1,) scalar -> SMEM

    resident = lambda i: (0, 0)   # same block every grid step -> stays in VMEM
    out = pl.pallas_call(
        _dqn_kernel,
        out_shape=jax.ShapeDtypeStruct((n_actions, b_pad), jnp.float32),
        grid_spec=pltpu.PrefetchScalarGridSpec(
            num_scalar_prefetch=0,
            grid=(n_tiles,),
            in_specs=[
                pl.BlockSpec((tile_b, obs_size), lambda i: (i, 0)),   # obs tile
                pl.BlockSpec((n_actions, fc), resident),              # emb table
                pl.BlockSpec((obs_size, fc), resident),               # W1_obs
                pl.BlockSpec((fc, fc), resident),                     # W2
                pl.BlockSpec((1, fc), resident),                      # b2
                pl.BlockSpec((fc, fc), resident),                     # W3
                pl.BlockSpec((1, fc), resident),                      # b3
                pl.BlockSpec((1, fc), resident),                      # w4 row
                pl.BlockSpec(memory_space=pltpu.MemorySpace.SMEM),    # b4 scalar
            ],
            out_specs=pl.BlockSpec((n_actions, tile_b), lambda i: (0, i)),
        ),
        compiler_params=pltpu.CompilerParams(
            dimension_semantics=("parallel",),
        ),
    )(obs_bf, emb_tab, w1_obs, w2b, b2f, w3b, b3f, w4row, b4s)
    return out[:, :batch].T                                # (B, n_actions)


# ---------------------------------------------------------------------------
# Module wrapper (parameters + forward matching the PyTorch OneValueDQN)
# ---------------------------------------------------------------------------
class OneValueDQN:
    def __init__(self, observation_size, fc_dims, action_emb_dims, n_actions,
                 key, dtype=jnp.float32, eps=1e-5):
        self.n_actions = n_actions
        self.eps = eps
        d_in = observation_size + action_emb_dims
        ks = jax.random.split(key, 9)

        def linear_init(k, fan_in, fan_out):
            # PyTorch nn.Linear default init; weights stored [in, out].
            bound = 1.0 / math.sqrt(fan_in)
            kw, kb = jax.random.split(k)
            w = jax.random.uniform(kw, (fan_in, fan_out), dtype, -bound, bound)
            b = jax.random.uniform(kb, (1, fan_out), dtype, -bound, bound)
            return w, b

        self.action_emb = jax.random.normal(ks[0], (n_actions, action_emb_dims), dtype)
        # BatchNorm1d parameters / running stats (eval mode); randomized so the
        # BN path is actually exercised by the correctness check.
        self.bn_gamma = 1.0 + 0.1 * jax.random.normal(ks[1], (d_in,), dtype)
        self.bn_beta = 0.1 * jax.random.normal(ks[2], (d_in,), dtype)
        self.bn_mean = 0.1 * jax.random.normal(ks[3], (d_in,), dtype)
        self.bn_var = jnp.abs(1.0 + 0.1 * jax.random.normal(ks[4], (d_in,), dtype))

        self.w1, self.b1 = linear_init(ks[5], d_in, fc_dims)
        self.w2, self.b2 = linear_init(ks[6], fc_dims, fc_dims)
        self.w3, self.b3 = linear_init(ks[7], fc_dims, fc_dims)
        self.w4, self.b4 = linear_init(ks[8], fc_dims, 1)

    def __call__(self, observation):
        """observation: [B, observation_size] -> q-values: [B, n_actions, 1]."""
        q = dqn_forward_pallas(observation, self.action_emb,
                               self.bn_gamma, self.bn_beta, self.bn_mean,
                               self.bn_var, self.eps,
                               self.w1, self.b1, self.w2, self.b2,
                               self.w3, self.b3, self.w4, self.b4)
        return q[:, :, None]


# ---------------------------------------------------------------------------
# Pure-JAX reference (mirrors the PyTorch per-action loop, eval-mode BN, f32)
# ---------------------------------------------------------------------------
def reference_forward(model: OneValueDQN, observation):
    outs = []
    for a in range(model.n_actions):
        emb = jnp.broadcast_to(model.action_emb[a],
                               (observation.shape[0], model.action_emb.shape[1]))
        x = jnp.concatenate([observation, emb], axis=-1)
        x = (x - model.bn_mean) / jnp.sqrt(model.bn_var + model.eps) \
            * model.bn_gamma + model.bn_beta
        h = jnp.maximum(x @ model.w1 + model.b1, 0.0)
        h = jnp.maximum(h @ model.w2 + model.b2, 0.0)
        h = jnp.maximum(h @ model.w3 + model.b3, 0.0)
        q = h @ model.w4 + model.b4
        outs.append(q)
    return jnp.stack(outs, axis=1)


# ---------------------------------------------------------------------------
# Demo / smoke test
# ---------------------------------------------------------------------------
if __name__ == "__main__":
    key = jax.random.PRNGKey(0)
    k_param, k_obs = jax.random.split(key)

    observation_size, fc_dims, action_emb_dims, n_actions, batch = 32, 64, 16, 4, 8
    model = OneValueDQN(observation_size, fc_dims, action_emb_dims, n_actions, k_param)
    obs = jax.random.normal(k_obs, (batch, observation_size), jnp.float32)

    q = jax.block_until_ready(model(obs))
    assert q.shape == (batch, n_actions, 1), q.shape

    q_ref = reference_forward(model, obs)
    err = float(jnp.max(jnp.abs(q - q_ref)))
    # bf16 matmul inputs (f32 accumulation) -> looser tolerance than pure f32.
    assert jnp.allclose(q, q_ref, rtol=1e-2, atol=1e-2), err

    print("KERNEL_OK")
</pallas_src>

<mosaic_0001>
module attributes {stable_mosaic.version = 11 : i64} {
  func.func @_dqn_kernel(%arg0: i32, %arg1: memref<128x32xbf16, #tpu.memory_space<vmem>>, %arg2: memref<4x64xf32, #tpu.memory_space<vmem>>, %arg3: memref<32x64xbf16, #tpu.memory_space<vmem>>, %arg4: memref<64x64xbf16, #tpu.memory_space<vmem>>, %arg5: memref<1x64xf32, #tpu.memory_space<vmem>>, %arg6: memref<64x64xbf16, #tpu.memory_space<vmem>>, %arg7: memref<1x64xf32, #tpu.memory_space<vmem>>, %arg8: memref<1x64xf32, #tpu.memory_space<vmem>>, %arg9: memref<1xf32, #tpu.memory_space<smem>>, %arg10: memref<4x128xf32, #tpu.memory_space<vmem>>) attributes {dimension_semantics = [#tpu.dimension_semantics<parallel>], iteration_bounds = array<i64: 1>, scalar_prefetch = 0 : i64, scratch_operands = 0 : i64, tpu.core_type = #tpu.core_type<tc>, window_params = [{transform_indices = @transform_0, window_bounds = array<i64: 128, 32>}, {pipeline_mode = #tpu.pipeline_mode<synchronous>, transform_indices = @transform_1, window_bounds = array<i64: 4, 64>}, {pipeline_mode = #tpu.pipeline_mode<synchronous>, transform_indices = @transform_2, window_bounds = array<i64: 32, 64>}, {pipeline_mode = #tpu.pipeline_mode<synchronous>, transform_indices = @transform_3, window_bounds = array<i64: 64, 64>}, {pipeline_mode = #tpu.pipeline_mode<synchronous>, transform_indices = @transform_4, window_bounds = array<i64: 1, 64>}, {pipeline_mode = #tpu.pipeline_mode<synchronous>, transform_indices = @transform_5, window_bounds = array<i64: 64, 64>}, {pipeline_mode = #tpu.pipeline_mode<synchronous>, transform_indices = @transform_6, window_bounds = array<i64: 1, 64>}, {pipeline_mode = #tpu.pipeline_mode<synchronous>, transform_indices = @transform_7, window_bounds = array<i64: 1, 64>}, {transform_indices = @transform_8, window_bounds = array<i64: 1>}, {transform_indices = @transform_9, window_bounds = array<i64: 4, 128>}]} {
    %c0 = arith.constant 0 : index
    %c0_0 = arith.constant 0 : index
    %0 = vector.load %arg1[%c0, %c0_0] : memref<128x32xbf16, #tpu.memory_space<vmem>>, vector<128x32xbf16>
    %c0_1 = arith.constant 0 : index
    %c0_2 = arith.constant 0 : index
    %1 = vector.load %arg3[%c0_1, %c0_2] : memref<32x64xbf16, #tpu.memory_space<vmem>>, vector<32x64xbf16>
    %cst = arith.constant dense<0.000000e+00> : vector<128x64xf32>
    %2 = tpu.matmul %0, %1, %cst {dimension_numbers = #tpu.dot_dimension_numbers<[1], [0], [0], [1], [0, 0, 1, 1], [], []>} : vector<128x32xbf16>, vector<32x64xbf16>, vector<128x64xf32> -> vector<128x64xf32>
    %c0_3 = arith.constant 0 : index
    %c0_4 = arith.constant 0 : index
    %3 = vector.load %arg4[%c0_3, %c0_4] : memref<64x64xbf16, #tpu.memory_space<vmem>>, vector<64x64xbf16>
    %c0_5 = arith.constant 0 : index
    %c0_6 = arith.constant 0 : index
    %4 = vector.load %arg5[%c0_5, %c0_6] : memref<1x64xf32, #tpu.memory_space<vmem>>, vector<1x64xf32>
    %c0_7 = arith.constant 0 : index
    %c0_8 = arith.constant 0 : index
    %5 = vector.load %arg6[%c0_7, %c0_8] : memref<64x64xbf16, #tpu.memory_space<vmem>>, vector<64x64xbf16>
    %c0_9 = arith.constant 0 : index
    %c0_10 = arith.constant 0 : index
    %6 = vector.load %arg7[%c0_9, %c0_10] : memref<1x64xf32, #tpu.memory_space<vmem>>, vector<1x64xf32>
    %c0_11 = arith.constant 0 : index
    %c0_12 = arith.constant 0 : index
    %7 = vector.load %arg8[%c0_11, %c0_12] : memref<1x64xf32, #tpu.memory_space<vmem>>, vector<1x64xf32>
    %c0_13 = arith.constant 0 : index
    %8 = memref.load %arg9[%c0_13] : memref<1xf32, #tpu.memory_space<smem>>
    %c0_14 = arith.constant 0 : index
    %c0_15 = arith.constant 0 : index
    %9 = vector.load %arg2[%c0_14, %c0_15] : memref<4x64xf32, #tpu.memory_space<vmem>>, vector<1x64xf32>
    %10 = vector.shape_cast %9 : vector<1x64xf32> to vector<64xf32>
    %11 = vector.shape_cast %10 : vector<64xf32> to vector<1x64xf32>
    %12 = vector.broadcast %11 : vector<1x64xf32> to vector<128x64xf32>
    %13 = arith.addf %2, %12 : vector<128x64xf32>
    %cst_16 = arith.constant 0.000000e+00 : f32
    %14 = vector.broadcast %cst_16 : f32 to vector<128x64xf32>
    %15 = arith.maximumf %13, %14 : vector<128x64xf32>
    %16 = arith.truncf %15 : vector<128x64xf32> to vector<128x64xbf16>
    %cst_17 = arith.constant dense<0.000000e+00> : vector<128x64xf32>
    %17 = tpu.matmul %16, %3, %cst_17 {dimension_numbers = #tpu.dot_dimension_numbers<[1], [0], [0], [1], [0, 0, 1, 1], [], []>} : vector<128x64xbf16>, vector<64x64xbf16>, vector<128x64xf32> -> vector<128x64xf32>
    %18 = vector.broadcast %4 : vector<1x64xf32> to vector<128x64xf32>
    %19 = arith.addf %17, %18 : vector<128x64xf32>
    %cst_18 = arith.constant 0.000000e+00 : f32
    %20 = vector.broadcast %cst_18 : f32 to vector<128x64xf32>
    %21 = arith.maximumf %19, %20 : vector<128x64xf32>
    %22 = arith.truncf %21 : vector<128x64xf32> to vector<128x64xbf16>
    %cst_19 = arith.constant dense<0.000000e+00> : vector<128x64xf32>
    %23 = tpu.matmul %22, %5, %cst_19 {dimension_numbers = #tpu.dot_dimension_numbers<[1], [0], [0], [1], [0, 0, 1, 1], [], []>} : vector<128x64xbf16>, vector<64x64xbf16>, vector<128x64xf32> -> vector<128x64xf32>
    %24 = vector.broadcast %6 : vector<1x64xf32> to vector<128x64xf32>
    %25 = arith.addf %23, %24 : vector<128x64xf32>
    %cst_20 = arith.constant 0.000000e+00 : f32
    %26 = vector.broadcast %cst_20 : f32 to vector<128x64xf32>
    %27 = arith.maximumf %25, %26 : vector<128x64xf32>
    %28 = vector.broadcast %7 : vector<1x64xf32> to vector<128x64xf32>
    %29 = arith.mulf %27, %28 : vector<128x64xf32>
    %cst_21 = arith.constant dense<0.000000e+00> : vector<128xf32>
    %30 = vector.multi_reduction <add>, %29, %cst_21 [1] : vector<128x64xf32> to vector<128xf32>
    %31 = vector.broadcast %8 : f32 to vector<128xf32>
    %32 = arith.addf %30, %31 : vector<128xf32>
    %c0_22 = arith.constant 0 : index
    %c0_23 = arith.constant 0 : index
    %33 = vector.load %arg10[%c0_22, %c0_23] : memref<4x128xf32, #tpu.memory_space<vmem>>, vector<1x128xf32>
    %34 = vector.shape_cast %33 : vector<1x128xf32> to vector<128xf32>
    %35 = vector.shape_cast %32 : vector<128xf32> to vector<1x128xf32>
    tpu.vector_store %arg10[%c0_22, %c0_23], %35 {strides = array<i32>} : memref<4x128xf32, #tpu.memory_space<vmem>>, vector<1x128xf32>,
    %c1 = arith.constant 1 : index
    %c0_24 = arith.constant 0 : index
    %36 = vector.load %arg2[%c1, %c0_24] : memref<4x64xf32, #tpu.memory_space<vmem>>, vector<1x64xf32>
    %37 = vector.shape_cast %36 : vector<1x64xf32> to vector<64xf32>
    %38 = vector.shape_cast %37 : vector<64xf32> to vector<1x64xf32>
    %39 = vector.broadcast %38 : vector<1x64xf32> to vector<128x64xf32>
    %40 = arith.addf %2, %39 : vector<128x64xf32>
    %cst_25 = arith.constant 0.000000e+00 : f32
    %41 = vector.broadcast %cst_25 : f32 to vector<128x64xf32>
    %42 = arith.maximumf %40, %41 : vector<128x64xf32>
    %43 = arith.truncf %42 : vector<128x64xf32> to vector<128x64xbf16>
    %cst_26 = arith.constant dense<0.000000e+00> : vector<128x64xf32>
    %44 = tpu.matmul %43, %3, %cst_26 {dimension_numbers = #tpu.dot_dimension_numbers<[1], [0], [0], [1], [0, 0, 1, 1], [], []>} : vector<128x64xbf16>, vector<64x64xbf16>, vector<128x64xf32> -> vector<128x64xf32>
    %45 = vector.broadcast %4 : vector<1x64xf32> to vector<128x64xf32>
    %46 = arith.addf %44, %45 : vector<128x64xf32>
    %cst_27 = arith.constant 0.000000e+00 : f32
    %47 = vector.broadcast %cst_27 : f32 to vector<128x64xf32>
    %48 = arith.maximumf %46, %47 : vector<128x64xf32>
    %49 = arith.truncf %48 : vector<128x64xf32> to vector<128x64xbf16>
    %cst_28 = arith.constant dense<0.000000e+00> : vector<128x64xf32>
    %50 = tpu.matmul %49, %5, %cst_28 {dimension_numbers = #tpu.dot_dimension_numbers<[1], [0], [0], [1], [0, 0, 1, 1], [], []>} : vector<128x64xbf16>, vector<64x64xbf16>, vector<128x64xf32> -> vector<128x64xf32>
    %51 = vector.broadcast %6 : vector<1x64xf32> to vector<128x64xf32>
    %52 = arith.addf %50, %51 : vector<128x64xf32>
    %cst_29 = arith.constant 0.000000e+00 : f32
    %53 = vector.broadcast %cst_29 : f32 to vector<128x64xf32>
    %54 = arith.maximumf %52, %53 : vector<128x64xf32>
    %55 = vector.broadcast %7 : vector<1x64xf32> to vector<128x64xf32>
    %56 = arith.mulf %54, %55 : vector<128x64xf32>
    %cst_30 = arith.constant dense<0.000000e+00> : vector<128xf32>
    %57 = vector.multi_reduction <add>, %56, %cst_30 [1] : vector<128x64xf32> to vector<128xf32>
    %58 = vector.broadcast %8 : f32 to vector<128xf32>
    %59 = arith.addf %57, %58 : vector<128xf32>
    %c1_31 = arith.constant 1 : index
    %c0_32 = arith.constant 0 : index
    %60 = vector.load %arg10[%c1_31, %c0_32] : memref<4x128xf32, #tpu.memory_space<vmem>>, vector<1x128xf32>
    %61 = vector.shape_cast %60 : vector<1x128xf32> to vector<128xf32>
    %62 = vector.shape_cast %59 : vector<128xf32> to vector<1x128xf32>
    tpu.vector_store %arg10[%c1_31, %c0_32], %62 {strides = array<i32>} : memref<4x128xf32, #tpu.memory_space<vmem>>, vector<1x128xf32>,
    %c2 = arith.constant 2 : index
    %c0_33 = arith.constant 0 : index
    %63 = vector.load %arg2[%c2, %c0_33] : memref<4x64xf32, #tpu.memory_space<vmem>>, vector<1x64xf32>
    %64 = vector.shape_cast %63 : vector<1x64xf32> to vector<64xf32>
    %65 = vector.shape_cast %64 : vector<64xf32> to vector<1x64xf32>
    %66 = vector.broadcast %65 : vector<1x64xf32> to vector<128x64xf32>
    %67 = arith.addf %2, %66 : vector<128x64xf32>
    %cst_34 = arith.constant 0.000000e+00 : f32
    %68 = vector.broadcast %cst_34 : f32 to vector<128x64xf32>
    %69 = arith.maximumf %67, %68 : vector<128x64xf32>
    %70 = arith.truncf %69 : vector<128x64xf32> to vector<128x64xbf16>
    %cst_35 = arith.constant dense<0.000000e+00> : vector<128x64xf32>
    %71 = tpu.matmul %70, %3, %cst_35 {dimension_numbers = #tpu.dot_dimension_numbers<[1], [0], [0], [1], [0, 0, 1, 1], [], []>} : vector<128x64xbf16>, vector<64x64xbf16>, vector<128x64xf32> -> vector<128x64xf32>
    %72 = vector.broadcast %4 : vector<1x64xf32> to vector<128x64xf32>
    %73 = arith.addf %71, %72 : vector<128x64xf32>
    %cst_36 = arith.constant 0.000000e+00 : f32
    %74 = vector.broadcast %cst_36 : f32 to vector<128x64xf32>
    %75 = arith.maximumf %73, %74 : vector<128x64xf32>
    %76 = arith.truncf %75 : vector<128x64xf32> to vector<128x64xbf16>
    %cst_37 = arith.constant dense<0.000000e+00> : vector<128x64xf32>
    %77 = tpu.matmul %76, %5, %cst_37 {dimension_numbers = #tpu.dot_dimension_numbers<[1], [0], [0], [1], [0, 0, 1, 1], [], []>} : vector<128x64xbf16>, vector<64x64xbf16>, vector<128x64xf32> -> vector<128x64xf32>
    %78 = vector.broadcast %6 : vector<1x64xf32> to vector<128x64xf32>
    %79 = arith.addf %77, %78 : vector<128x64xf32>
    %cst_38 = arith.constant 0.000000e+00 : f32
    %80 = vector.broadcast %cst_38 : f32 to vector<128x64xf32>
    %81 = arith.maximumf %79, %80 : vector<128x64xf32>
    %82 = vector.broadcast %7 : vector<1x64xf32> to vector<128x64xf32>
    %83 = arith.mulf %81, %82 : vector<128x64xf32>
    %cst_39 = arith.constant dense<0.000000e+00> : vector<128xf32>
    %84 = vector.multi_reduction <add>, %83, %cst_39 [1] : vector<128x64xf32> to vector<128xf32>
    %85 = vector.broadcast %8 : f32 to vector<128xf32>
    %86 = arith.addf %84, %85 : vector<128xf32>
    %c2_40 = arith.constant 2 : index
    %c0_41 = arith.constant 0 : index
    %87 = vector.load %arg10[%c2_40, %c0_41] : memref<4x128xf32, #tpu.memory_space<vmem>>, vector<1x128xf32>
    %88 = vector.shape_cast %87 : vector<1x128xf32> to vector<128xf32>
    %89 = vector.shape_cast %86 : vector<128xf32> to vector<1x128xf32>
    tpu.vector_store %arg10[%c2_40, %c0_41], %89 {strides = array<i32>} : memref<4x128xf32, #tpu.memory_space<vmem>>, vector<1x128xf32>,
    %c3 = arith.constant 3 : index
    %c0_42 = arith.constant 0 : index
    %90 = vector.load %arg2[%c3, %c0_42] : memref<4x64xf32, #tpu.memory_space<vmem>>, vector<1x64xf32>
    %91 = vector.shape_cast %90 : vector<1x64xf32> to vector<64xf32>
    %92 = vector.shape_cast %91 : vector<64xf32> to vector<1x64xf32>
    %93 = vector.broadcast %92 : vector<1x64xf32> to vector<128x64xf32>
    %94 = arith.addf %2, %93 : vector<128x64xf32>
    %cst_43 = arith.constant 0.000000e+00 : f32
    %95 = vector.broadcast %cst_43 : f32 to vector<128x64xf32>
    %96 = arith.maximumf %94, %95 : vector<128x64xf32>
    %97 = arith.truncf %96 : vector<128x64xf32> to vector<128x64xbf16>
    %cst_44 = arith.constant dense<0.000000e+00> : vector<128x64xf32>
    %98 = tpu.matmul %97, %3, %cst_44 {dimension_numbers = #tpu.dot_dimension_numbers<[1], [0], [0], [1], [0, 0, 1, 1], [], []>} : vector<128x64xbf16>, vector<64x64xbf16>, vector<128x64xf32> -> vector<128x64xf32>
    %99 = vector.broadcast %4 : vector<1x64xf32> to vector<128x64xf32>
    %100 = arith.addf %98, %99 : vector<128x64xf32>
    %cst_45 = arith.constant 0.000000e+00 : f32
    %101 = vector.broadcast %cst_45 : f32 to vector<128x64xf32>
    %102 = arith.maximumf %100, %101 : vector<128x64xf32>
    %103 = arith.truncf %102 : vector<128x64xf32> to vector<128x64xbf16>
    %cst_46 = arith.constant dense<0.000000e+00> : vector<128x64xf32>
    %104 = tpu.matmul %103, %5, %cst_46 {dimension_numbers = #tpu.dot_dimension_numbers<[1], [0], [0], [1], [0, 0, 1, 1], [], []>} : vector<128x64xbf16>, vector<64x64xbf16>, vector<128x64xf32> -> vector<128x64xf32>
    %105 = vector.broadcast %6 : vector<1x64xf32> to vector<128x64xf32>
    %106 = arith.addf %104, %105 : vector<128x64xf32>
    %cst_47 = arith.constant 0.000000e+00 : f32
    %107 = vector.broadcast %cst_47 : f32 to vector<128x64xf32>
    %108 = arith.maximumf %106, %107 : vector<128x64xf32>
    %109 = vector.broadcast %7 : vector<1x64xf32> to vector<128x64xf32>
    %110 = arith.mulf %108, %109 : vector<128x64xf32>
    %cst_48 = arith.constant dense<0.000000e+00> : vector<128xf32>
    %111 = vector.multi_reduction <add>, %110, %cst_48 [1] : vector<128x64xf32> to vector<128xf32>
    %112 = vector.broadcast %8 : f32 to vector<128xf32>
    %113 = arith.addf %111, %112 : vector<128xf32>
    %c3_49 = arith.constant 3 : index
    %c0_50 = arith.constant 0 : index
    %114 = vector.load %arg10[%c3_49, %c0_50] : memref<4x128xf32, #tpu.memory_space<vmem>>, vector<1x128xf32>
    %115 = vector.shape_cast %114 : vector<1x128xf32> to vector<128xf32>
    %116 = vector.shape_cast %113 : vector<128xf32> to vector<1x128xf32>
    tpu.vector_store %arg10[%c3_49, %c0_50], %116 {strides = array<i32>} : memref<4x128xf32, #tpu.memory_space<vmem>>, vector<1x128xf32>,
    return
  }
  func.func @transform_0(%arg0: i32) -> (i32, i32) {
    %c0_i32 = arith.constant 0 : i32
    %c0_i32_0 = arith.constant 0 : i32
    return %arg0, %c0_i32 : i32, i32
  }
  func.func @transform_1(%arg0: i32) -> (i32, i32) {
    %c0_i32 = arith.constant 0 : i32
    %c0_i32_0 = arith.constant 0 : i32
    %c0_i32_1 = arith.constant 0 : i32
    return %c0_i32, %c0_i32_0 : i32, i32
  }
  func.func @transform_2(%arg0: i32) -> (i32, i32) {
    %c0_i32 = arith.constant 0 : i32
    %c0_i32_0 = arith.constant 0 : i32
    %c0_i32_1 = arith.constant 0 : i32
    return %c0_i32, %c0_i32_0 : i32, i32
  }
  func.func @transform_3(%arg0: i32) -> (i32, i32) {
    %c0_i32 = arith.constant 0 : i32
    %c0_i32_0 = arith.constant 0 : i32
    %c0_i32_1 = arith.constant 0 : i32
    return %c0_i32, %c0_i32_0 : i32, i32
  }
  func.func @transform_4(%arg0: i32) -> (i32, i32) {
    %c0_i32 = arith.constant 0 : i32
    %c0_i32_0 = arith.constant 0 : i32
    %c0_i32_1 = arith.constant 0 : i32
    return %c0_i32, %c0_i32_0 : i32, i32
  }
  func.func @transform_5(%arg0: i32) -> (i32, i32) {
    %c0_i32 = arith.constant 0 : i32
    %c0_i32_0 = arith.constant 0 : i32
    %c0_i32_1 = arith.constant 0 : i32
    return %c0_i32, %c0_i32_0 : i32, i32
  }
  func.func @transform_6(%arg0: i32) -> (i32, i32) {
    %c0_i32 = arith.constant 0 : i32
    %c0_i32_0 = arith.constant 0 : i32
    %c0_i32_1 = arith.constant 0 : i32
    return %c0_i32, %c0_i32_0 : i32, i32
  }
  func.func @transform_7(%arg0: i32) -> (i32, i32) {
    %c0_i32 = arith.constant 0 : i32
    %c0_i32_0 = arith.constant 0 : i32
    %c0_i32_1 = arith.constant 0 : i32
    return %c0_i32, %c0_i32_0 : i32, i32
  }
  func.func @transform_8(%arg0: i32) -> i32 {
    %c0_i32 = arith.constant 0 : i32
    %c0_i32_0 = arith.constant 0 : i32
    return %c0_i32 : i32
  }
  func.func @transform_9(%arg0: i32) -> (i32, i32) {
    %c0_i32 = arith.constant 0 : i32
    %c0_i32_0 = arith.constant 0 : i32
    return %c0_i32, %arg0 : i32, i32
  }
}

</mosaic_0001>

<llo_original>
// kernel: tpu_custom_call.1
$region0: #{tpu_custom_call.1}
  #allocation0 [shape = 'u32[]', space=smem, size = 0x4, offset = 0x4, fixed_abs, tag = 'smem constant byte address 0x4 - core index']
  #allocation1 [shape = 'u32[144,128]{1,0:T(1,128)}', space=vmem, size = 0x12000, scoped, tag = 'internal scratch']
  #allocation2 [shape = 'f32[1]{0:T(128)S(6)}', space=smem, size = 0x200, scoped, tag = 'scoped memory for tpu_custom_call.1']
  %s0 = inlined_call_operand.vmem [shape: bf16[128,32], index: 0, kind: input, shape index: {}]
  %s1 = inlined_call_operand.vmem [shape: f32[4,64], index: 1, kind: input, shape index: {}]
  %s2 = inlined_call_operand.vmem [shape: bf16[32,64], index: 2, kind: input, shape index: {}]
  %s3 = inlined_call_operand.vmem [shape: bf16[64,64], index: 3, kind: input, shape index: {}]
  %s4 = inlined_call_operand.vmem [shape: f32[1,64], index: 4, kind: input, shape index: {}]
  %s5 = inlined_call_operand.vmem [shape: bf16[64,64], index: 5, kind: input, shape index: {}]
  %s6 = inlined_call_operand.vmem [shape: f32[1,64], index: 6, kind: input, shape index: {}]
  %s7 = inlined_call_operand.vmem [shape: f32[1,64], index: 7, kind: input, shape index: {}]
  %s8 = inlined_call_operand.<no memory space> [shape: f32[1], index: 8, kind: input, shape index: {}]
  %s9 = inlined_call_operand.hbm [shape: f32[4,128], index: 9, kind: output, shape index: {}]
  %s10 = sld [smem:[#allocation0]]
  $region46: #{tpu_custom_call.1} parent=0
    _
  %s12 = ssub.s32 1, %s10
  %s13 = scalar_select 0, %s12, %s10
  %14 = sst [smem:[#allocation2]] %s8
  $region1: #{tpu_custom_call.1} parent=0
    #allocation3 [shape = 'u8[2048]{0}', space=vmem, size = 0x800, scoped, tag = 'output window, operand 0, single buffered']
    #allocation4 [shape = 's32[1]{0}', space=sflag, size = 0x4, scoped, tag = 'scoped memory for tpu_custom_call.1']
    %15 = vsyncpa [#allocation4], 0
    // Predicated region
    $region2: #{tpu_custom_call.1} parent=1 // pred_check
      _
    $region3: #{tpu_custom_call.1} parent=1 // pred_check_branch
      %17 = sbr.rel (0) target = $region5
    $region4: #{tpu_custom_call.1} parent=1 // pred_region
      _
    $region5: #{tpu_custom_call.1} parent=1 // pred_fallthru
      _
    // Predicated region
    $region6: #{tpu_custom_call.1} parent=1 // pred_check
      _
    $region7: #{tpu_custom_call.1} parent=1 // pred_check_branch
      %19 = sbr.rel (0) target = $region9
    $region8: #{tpu_custom_call.1} parent=1 // pred_region
      _
    $region9: #{tpu_custom_call.1} parent=1 // pred_fallthru
      _
    // Predicated region
    $region10: #{tpu_custom_call.1} parent=1 // pred_check
      _
    $region11: #{tpu_custom_call.1} parent=1 // pred_check_branch
      %21 = sbr.rel (0) target = $region13
    $region12: #{tpu_custom_call.1} parent=1 // pred_region
      _
    $region13: #{tpu_custom_call.1} parent=1 // pred_fallthru
      _
    // Predicated region
    $region14: #{tpu_custom_call.1} parent=1 // pred_check
      _
    $region15: #{tpu_custom_call.1} parent=1 // pred_check_branch
      %23 = sbr.rel (0) target = $region17
    $region16: #{tpu_custom_call.1} parent=1 // pred_region
      _
    $region17: #{tpu_custom_call.1} parent=1 // pred_fallthru
      _
    // Predicated region
    $region18: #{tpu_custom_call.1} parent=1 // pred_check
      _
    $region19: #{tpu_custom_call.1} parent=1 // pred_check_branch
      %25 = sbr.rel (0) target = $region21
    $region20: #{tpu_custom_call.1} parent=1 // pred_region
      _
    $region21: #{tpu_custom_call.1} parent=1 // pred_fallthru
      _
    // Predicated region
    $region22: #{tpu_custom_call.1} parent=1 // pred_check
      _
    $region23: #{tpu_custom_call.1} parent=1 // pred_check_branch
      %27 = sbr.rel (0) target = $region25
    $region24: #{tpu_custom_call.1} parent=1 // pred_region
      _
    $region25: #{tpu_custom_call.1} parent=1 // pred_fallthru
      _
    // Predicated region
    $region26: #{tpu_custom_call.1} parent=1 // pred_check
      _
    $region27: #{tpu_custom_call.1} parent=1 // pred_check_branch
      %29 = sbr.rel (0) target = $region29
    $region28: #{tpu_custom_call.1} parent=1 // pred_region
      _
    $region29: #{tpu_custom_call.1} parent=1 // pred_fallthru
      _
    // Predicated region
    $region30: #{tpu_custom_call.1} parent=1 // pred_check
      _
    $region31: #{tpu_custom_call.1} parent=1 // pred_check_branch
      %31 = sbr.rel (0) target = $region33
    $region32: #{tpu_custom_call.1} parent=1 // pred_region
      _
    $region33: #{tpu_custom_call.1} parent=1 // pred_fallthru
      _
    // Predicated region
    $region34: #{tpu_custom_call.1} parent=1 // pred_check
      _
    $region35: #{tpu_custom_call.1} parent=1 // pred_check_branch
      %33 = sbr.rel (0) target = $region37
    $region36: #{tpu_custom_call.1} parent=1 // pred_region
      _
    $region37: #{tpu_custom_call.1} parent=1 // pred_fallthru
      _
    %v35 = vld [vmem:[%s0] sm:$0xf]
    %v36 = vld [vmem:[%s0 + $0x4] sm:$0xf]
    %v37 = vld [vmem:[%s0 + $0x8] sm:$0xf]
    %v38 = vld [vmem:[%s0 + $0xc] sm:$0xf]
    %v39 = vld [vmem:[%s0 + $0x10] sm:$0xf]
    %v40 = vld [vmem:[%s0 + $0x14] sm:$0xf]
    %v41 = vld [vmem:[%s0 + $0x18] sm:$0xf]
    %v42 = vld [vmem:[%s0 + $0x1c] sm:$0xf]
    %v43 = vld [vmem:[%s0 + $0x20] sm:$0xf]
    %v44 = vld [vmem:[%s0 + $0x24] sm:$0xf]
    %v45 = vld [vmem:[%s0 + $0x28] sm:$0xf]
    %v46 = vld [vmem:[%s0 + $0x2c] sm:$0xf]
    %v47 = vld [vmem:[%s0 + $0x30] sm:$0xf]
    %v48 = vld [vmem:[%s0 + $0x34] sm:$0xf]
    %v49 = vld [vmem:[%s0 + $0x38] sm:$0xf]
    %v50 = vld [vmem:[%s0 + $0x3c] sm:$0xf]
    %v51 = vld [vmem:[%s2] sm:$0xf]
    %v52 = vld [vmem:[%s2 + $0x4] sm:$0xf]
    %v53 = vld [vmem:[%s2 + $0x8] sm:$0xf]
    %v54 = vld [vmem:[%s2 + $0xc] sm:$0xf]
    %v71 = vunpack.c.l.b16 %v35
    %v72 = vunpack.c.l.b16 %v36
    %v73 = vunpack.c.l.b16 %v37
    %v74 = vunpack.c.l.b16 %v38
    %v75 = vunpack.c.l.b16 %v39
    %v76 = vunpack.c.l.b16 %v40
    %v77 = vunpack.c.l.b16 %v41
    %v78 = vunpack.c.l.b16 %v42
    %v79 = vunpack.c.l.b16 %v43
    %v80 = vunpack.c.l.b16 %v44
    %v81 = vunpack.c.l.b16 %v45
    %v82 = vunpack.c.l.b16 %v46
    %v83 = vunpack.c.l.b16 %v47
    %v84 = vunpack.c.l.b16 %v48
    %v85 = vunpack.c.l.b16 %v49
    %v86 = vunpack.c.l.b16 %v50
    %v87 = vpack.c.b16 %v72, %v71
    %v88 = vpack.c.b16 %v74, %v73
    %v89 = vpack.c.b16 %v76, %v75
    %v90 = vpack.c.b16 %v78, %v77
    %v91 = vpack.c.b16 %v80, %v79
    %v92 = vpack.c.b16 %v82, %v81
    %v93 = vpack.c.b16 %v84, %v83
    %v94 = vpack.c.b16 %v86, %v85
    %v99 = vunpack.c.l.b16 %v51
    %v100 = vunpack.c.l.b16 %v52
    %v101 = vunpack.c.l.b16 %v53
    %v102 = vunpack.c.l.b16 %v54
    %v103 = vpack.c.b16 %v100, %v99
    %v104 = vpack.c.b16 %v102, %v101
    %vm107 = vcmask 261120
    %v109 = vsel %vm107, %v87, 0
    %v112 = vsel %vm107, %v88, 0
    %v115 = vsel %vm107, %v89, 0
    %v118 = vsel %vm107, %v90, 0
    %v121 = vsel %vm107, %v91, 0
    %v124 = vsel %vm107, %v92, 0
    %v127 = vsel %vm107, %v93, 0
    %v130 = vsel %vm107, %v94, 0
    %132 = vmatprep.subr.bf16.mxu0 0
    %133 = vmatpush1.bf16.msra.mxu0 %v103
    %134 = vmatprep.subr.bf16.mxu0 0
    %135 = vmatpush1.bf16.msra.mxu0 %v104
    %136 = vmatprep.subr.bf16.mxu0 0
    %137 = vmatpush1.bf16.msra.mxu0 0
    %138 = vmatprep.subr.bf16.mxu0 0
    %139 = vmatpush1.bf16.msra.mxu0 0
    %140 = vmatprep.subr.bf16.mxu0 0
    %141 = vmatpush1.bf16.msra.mxu0 0
    %142 = vmatprep.subr.bf16.mxu0 0
    %143 = vmatpush1.bf16.msra.mxu0 0
    %144 = vmatprep.subr.bf16.mxu0 0
    %145 = vmatpush1.bf16.msra.mxu0 0
    %146 = vmatprep.subr.bf16.mxu0 0
    %147 = vmatpush1.bf16.msra.mxu0 0
    %148 = vmatprep.subr.bf16.mxu0 0
    %149 = vmatpush1.bf16.msra.mxu0 0
    %150 = vmatprep.subr.bf16.mxu0 0
    %151 = vmatpush1.bf16.msra.mxu0 0
    %152 = vmatprep.subr.bf16.mxu0 0
    %153 = vmatpush1.bf16.msra.mxu0 0
    %154 = vmatprep.subr.bf16.mxu0 0
    %155 = vmatpush1.bf16.msra.mxu0 0
    %156 = vmatprep.subr.bf16.mxu0 0
    %157 = vmatpush1.bf16.msra.mxu0 0
    %158 = vmatprep.subr.bf16.mxu0 0
    %159 = vmatpush1.bf16.msra.mxu0 0
    %160 = vmatprep.subr.bf16.mxu0 0
    %161 = vmatpush1.bf16.msra.mxu0 0
    %162 = vmatprep.subr.bf16.mxu0 0
    %163 = vmatpush1.bf16.msra.mxu0 0
    %164 = vmatprep.mubr.bf16.mxu0 0
    %165 = vmatmul.mubr.bf16.gmra.mrb[0].mxu0 %v109
    %v166 = vpop.f32.mrb[0].mxu0
    %v167 = vadd.f32 0.0, %v166
    %v168 = vpop.f32.mrb[0].mxu0
    %v169 = vpop.f32.mrb[0].mxu0
    %v170 = vadd.f32 0.0, %v169
    %v171 = vpop.f32.mrb[0].mxu0
    %172 = vmatprep.mubr.bf16.mxu0 0
    %173 = vmatmul.mubr.bf16.gmra.mrb[0].mxu0 %v112
    %v174 = vpop.f32.mrb[0].mxu0
    %v175 = vadd.f32 0.0, %v174
    %v176 = vpop.f32.mrb[0].mxu0
    %v177 = vpop.f32.mrb[0].mxu0
    %v178 = vadd.f32 0.0, %v177
    %v179 = vpop.f32.mrb[0].mxu0
    %180 = vmatprep.mubr.bf16.mxu0 0
    %181 = vmatmul.mubr.bf16.gmra.mrb[0].mxu0 %v115
    %v182 = vpop.f32.mrb[0].mxu0
    %v183 = vadd.f32 0.0, %v182
    %v184 = vpop.f32.mrb[0].mxu0
    %v185 = vpop.f32.mrb[0].mxu0
    %v186 = vadd.f32 0.0, %v185
    %v187 = vpop.f32.mrb[0].mxu0
    %188 = vmatprep.mubr.bf16.mxu0 0
    %189 = vmatmul.mubr.bf16.gmra.mrb[0].mxu0 %v118
    %v190 = vpop.f32.mrb[0].mxu0
    %v191 = vadd.f32 0.0, %v190
    %v192 = vpop.f32.mrb[0].mxu0
    %v193 = vpop.f32.mrb[0].mxu0
    %v194 = vadd.f32 0.0, %v193
    %v195 = vpop.f32.mrb[0].mxu0
    %196 = vmatprep.mubr.bf16.mxu0 0
    %197 = vmatmul.mubr.bf16.gmra.mrb[0].mxu0 %v121
    %v198 = vpop.f32.mrb[0].mxu0
    %v199 = vadd.f32 0.0, %v198
    %v200 = vpop.f32.mrb[0].mxu0
    %v201 = vpop.f32.mrb[0].mxu0
    %v202 = vadd.f32 0.0, %v201
    %v203 = vpop.f32.mrb[0].mxu0
    %204 = vmatprep.mubr.bf16.mxu0 0
    %205 = vmatmul.mubr.bf16.gmra.mrb[0].mxu0 %v124
    %v206 = vpop.f32.mrb[0].mxu0
    %v207 = vadd.f32 0.0, %v206
    %v208 = vpop.f32.mrb[0].mxu0
    %v209 = vpop.f32.mrb[0].mxu0
    %v210 = vadd.f32 0.0, %v209
    %v211 = vpop.f32.mrb[0].mxu0
    %212 = vmatprep.mubr.bf16.mxu0 0
    %213 = vmatmul.mubr.bf16.gmra.mrb[0].mxu0 %v127
    %v214 = vpop.f32.mrb[0].mxu0
    %v215 = vadd.f32 0.0, %v214
    %v216 = vpop.f32.mrb[0].mxu0
    %v217 = vpop.f32.mrb[0].mxu0
    %v218 = vadd.f32 0.0, %v217
    %v219 = vpop.f32.mrb[0].mxu0
    %220 = vmatprep.mubr.bf16.mxu0 0
    %221 = vmatmul.mubr.bf16.gmra.mrb[0].mxu0 %v130
    %v222 = vpop.f32.mrb[0].mxu0
    %v223 = vadd.f32 0.0, %v222
    %v224 = vpop.f32.mrb[0].mxu0
    %v225 = vpop.f32.mrb[0].mxu0
    %v226 = vadd.f32 0.0, %v225
    %v227 = vpop.f32.mrb[0].mxu0
    %228 = vdwg.mxu0
    %v229 = vld [vmem:[%s3] sm:$0xf]
    %v230 = vld [vmem:[%s3 + $0x4] sm:$0xf]
    %v231 = vld [vmem:[%s3 + $0x8] sm:$0xf]
    %v232 = vld [vmem:[%s3 + $0xc] sm:$0xf]
    %v233 = vld [vmem:[%s3 + $0x10] sm:$0xf]
    %v234 = vld [vmem:[%s3 + $0x14] sm:$0xf]
    %v235 = vld [vmem:[%s3 + $0x18] sm:$0xf]
    %v236 = vld [vmem:[%s3 + $0x1c] sm:$0xf]
    %v237 = vld [vmem:[%s4] sm:$0x1]
    %v238 = vld [vmem:[%s5] sm:$0xf]
    %v239 = vld [vmem:[%s5 + $0x4] sm:$0xf]
    %v240 = vld [vmem:[%s5 + $0x8] sm:$0xf]
    %v241 = vld [vmem:[%s5 + $0xc] sm:$0xf]
    %v242 = vld [vmem:[%s5 + $0x10] sm:$0xf]
    %v243 = vld [vmem:[%s5 + $0x14] sm:$0xf]
    %v244 = vld [vmem:[%s5 + $0x18] sm:$0xf]
    %v245 = vld [vmem:[%s5 + $0x1c] sm:$0xf]
    %v246 = vld [vmem:[%s6] sm:$0x1]
    %v247 = vld [vmem:[%s7] sm:$0x1]
    %s248 = sld [smem:[#allocation2]]
    %v249 = vld [vmem:[%s1] sm:$0x1]
    %v250 = vlaneseq
    %v251 = vshrl.u32 %v250, 7
    %v252 = vsub.s32 0, %v251
    %v253 = vrot.slane %v249, %v252
    %v254 = vadd.f32 %v167, %v253
    %v255 = vadd.f32 %v170, %v253
    %v256 = vadd.f32 %v175, %v253
    %v257 = vadd.f32 %v178, %v253
    %v258 = vadd.f32 %v183, %v253
    %v259 = vadd.f32 %v186, %v253
    %v260 = vadd.f32 %v191, %v253
    %v261 = vadd.f32 %v194, %v253
    %v262 = vadd.f32 %v199, %v253
    %v263 = vadd.f32 %v202, %v253
    %v264 = vadd.f32 %v207, %v253
    %v265 = vadd.f32 %v210, %v253
    %v266 = vadd.f32 %v215, %v253
    %v267 = vadd.f32 %v218, %v253
    %v268 = vadd.f32 %v223, %v253
    %v269 = vadd.f32 %v226, %v253
    %v270 = vmax.f32 %v254, 0.0
    %v271 = vmax.f32 %v255, 0.0
    %v272 = vmax.f32 %v256, 0.0
    %v273 = vmax.f32 %v257, 0.0
    %v274 = vmax.f32 %v258, 0.0
    %v275 = vmax.f32 %v259, 0.0
    %v276 = vmax.f32 %v260, 0.0
    %v277 = vmax.f32 %v261, 0.0
    %v278 = vmax.f32 %v262, 0.0
    %v279 = vmax.f32 %v263, 0.0
    %v280 = vmax.f32 %v264, 0.0
    %v281 = vmax.f32 %v265, 0.0
    %v282 = vmax.f32 %v266, 0.0
    %v283 = vmax.f32 %v267, 0.0
    %v284 = vmax.f32 %v268, 0.0
    %v285 = vmax.f32 %v269, 0.0
    %v286 = vpack.c.bf16 %v271, %v270
    %v287 = vpack.c.bf16 %v273, %v272
    %v288 = vpack.c.bf16 %v275, %v274
    %v289 = vpack.c.bf16 %v277, %v276
    %v290 = vpack.c.bf16 %v279, %v278
    %v291 = vpack.c.bf16 %v281, %v280
    %v292 = vpack.c.bf16 %v283, %v282
    %v293 = vpack.c.bf16 %v285, %v284
    %v295 = vlaneseq
    %v296 = vshrl.u32 %v295, 7
    %v297 = vsub.s32 0, %v296
    %v298 = vrot.slane %v237, %v297
    %v308 = vunpack.c.l.b16 %v229
    %v309 = vunpack.c.l.b16 %v230
    %v310 = vunpack.c.l.b16 %v231
    %v311 = vunpack.c.l.b16 %v232
    %v312 = vunpack.c.l.b16 %v233
    %v313 = vunpack.c.l.b16 %v234
    %v314 = vunpack.c.l.b16 %v235
    %v315 = vunpack.c.l.b16 %v236
    %v316 = vpack.c.b16 %v309, %v308
    %v317 = vpack.c.b16 %v311, %v310
    %v318 = vpack.c.b16 %v313, %v312
    %v319 = vpack.c.b16 %v315, %v314
    %vm324 = vcmask 523264
    %v326 = vsel %vm324, %v286, 0
    %v329 = vsel %vm324, %v287, 0
    %v332 = vsel %vm324, %v288, 0
    %v335 = vsel %vm324, %v289, 0
    %v338 = vsel %vm324, %v290, 0
    %v341 = vsel %vm324, %v291, 0
    %v344 = vsel %vm324, %v292, 0
    %v347 = vsel %vm324, %v293, 0
    %349 = vmatprep.subr.bf16.mxu0 0
    %350 = vmatpush1.bf16.msra.mxu0 %v316
    %351 = vmatprep.subr.bf16.mxu0 0
    %352 = vmatpush1.bf16.msra.mxu0 %v317
    %353 = vmatprep.subr.bf16.mxu0 0
    %354 = vmatpush1.bf16.msra.mxu0 %v318
    %355 = vmatprep.subr.bf16.mxu0 0
    %356 = vmatpush1.bf16.msra.mxu0 %v319
    %357 = vmatprep.subr.bf16.mxu0 0
    %358 = vmatpush1.bf16.msra.mxu0 0
    %359 = vmatprep.subr.bf16.mxu0 0
    %360 = vmatpush1.bf16.msra.mxu0 0
    %361 = vmatprep.subr.bf16.mxu0 0
    %362 = vmatpush1.bf16.msra.mxu0 0
    %363 = vmatprep.subr.bf16.mxu0 0
    %364 = vmatpush1.bf16.msra.mxu0 0
    %365 = vmatprep.subr.bf16.mxu0 0
    %366 = vmatpush1.bf16.msra.mxu0 0
    %367 = vmatprep.subr.bf16.mxu0 0
    %368 = vmatpush1.bf16.msra.mxu0 0
    %369 = vmatprep.subr.bf16.mxu0 0
    %370 = vmatpush1.bf16.msra.mxu0 0
    %371 = vmatprep.subr.bf16.mxu0 0
    %372 = vmatpush1.bf16.msra.mxu0 0
    %373 = vmatprep.subr.bf16.mxu0 0
    %374 = vmatpush1.bf16.msra.mxu0 0
    %375 = vmatprep.subr.bf16.mxu0 0
    %376 = vmatpush1.bf16.msra.mxu0 0
    %377 = vmatprep.subr.bf16.mxu0 0
    %378 = vmatpush1.bf16.msra.mxu0 0
    %379 = vmatprep.subr.bf16.mxu0 0
    %380 = vmatpush1.bf16.msra.mxu0 0
    %381 = vmatprep.mubr.bf16.mxu0 0
    %382 = vmatmul.mubr.bf16.gmra.mrb[0].mxu0 %v326
    %v383 = vpop.f32.mrb[0].mxu0
    %v384 = vadd.f32 %v298, %v383
    %v385 = vpop.f32.mrb[0].mxu0
    %v386 = vpop.f32.mrb[0].mxu0
    %v387 = vadd.f32 %v298, %v386
    %v388 = vpop.f32.mrb[0].mxu0
    %389 = vmatprep.mubr.bf16.mxu0 0
    %390 = vmatmul.mubr.bf16.gmra.mrb[0].mxu0 %v329
    %v391 = vpop.f32.mrb[0].mxu0
    %v392 = vadd.f32 %v298, %v391
    %v393 = vpop.f32.mrb[0].mxu0
    %v394 = vpop.f32.mrb[0].mxu0
    %v395 = vadd.f32 %v298, %v394
    %v396 = vpop.f32.mrb[0].mxu0
    %397 = vmatprep.mubr.bf16.mxu0 0
    %398 = vmatmul.mubr.bf16.gmra.mrb[0].mxu0 %v332
    %v399 = vpop.f32.mrb[0].mxu0
    %v400 = vadd.f32 %v298, %v399
    %v401 = vpop.f32.mrb[0].mxu0
    %v402 = vpop.f32.mrb[0].mxu0
    %v403 = vadd.f32 %v298, %v402
    %v404 = vpop.f32.mrb[0].mxu0
    %405 = vmatprep.mubr.bf16.mxu0 0
    %406 = vmatmul.mubr.bf16.gmra.mrb[0].mxu0 %v335
    %v407 = vpop.f32.mrb[0].mxu0
    %v408 = vadd.f32 %v298, %v407
    %v409 = vpop.f32.mrb[0].mxu0
    %v410 = vpop.f32.mrb[0].mxu0
    %v411 = vadd.f32 %v298, %v410
    %v412 = vpop.f32.mrb[0].mxu0
    %413 = vmatprep.mubr.bf16.mxu0 0
    %414 = vmatmul.mubr.bf16.gmra.mrb[0].mxu0 %v338
    %v415 = vpop.f32.mrb[0].mxu0
    %v416 = vadd.f32 %v298, %v415
    %v417 = vpop.f32.mrb[0].mxu0
    %v418 = vpop.f32.mrb[0].mxu0
    %v419 = vadd.f32 %v298, %v418
    %v420 = vpop.f32.mrb[0].mxu0
    %421 = vmatprep.mubr.bf16.mxu0 0
    %422 = vmatmul.mubr.bf16.gmra.mrb[0].mxu0 %v341
    %v423 = vpop.f32.mrb[0].mxu0
    %v424 = vadd.f32 %v298, %v423
    %v425 = vpop.f32.mrb[0].mxu0
    %v426 = vpop.f32.mrb[0].mxu0
    %v427 = vadd.f32 %v298, %v426
    %v428 = vpop.f32.mrb[0].mxu0
    %429 = vmatprep.mubr.bf16.mxu0 0
    %430 = vmatmul.mubr.bf16.gmra.mrb[0].mxu0 %v344
    %v431 = vpop.f32.mrb[0].mxu0
    %v432 = vadd.f32 %v298, %v431
    %v433 = vpop.f32.mrb[0].mxu0
    %v434 = vpop.f32.mrb[0].mxu0
    %v435 = vadd.f32 %v298, %v434
    %v436 = vpop.f32.mrb[0].mxu0
    %437 = vmatprep.mubr.bf16.mxu0 0
    %438 = vmatmul.mubr.bf16.gmra.mrb[0].mxu0 %v347
    %v439 = vpop.f32.mrb[0].mxu0
    %v440 = vadd.f32 %v298, %v439
    %v441 = vpop.f32.mrb[0].mxu0
    %v442 = vpop.f32.mrb[0].mxu0
    %v443 = vadd.f32 %v298, %v442
    %v444 = vpop.f32.mrb[0].mxu0
    %445 = vdwg.mxu0
    %v446 = vmax.f32 %v384, 0.0
    %v447 = vmax.f32 %v387, 0.0
    %v448 = vmax.f32 %v392, 0.0
    %v449 = vmax.f32 %v395, 0.0
    %v450 = vmax.f32 %v400, 0.0
    %v451 = vmax.f32 %v403, 0.0
    %v452 = vmax.f32 %v408, 0.0
    %v453 = vmax.f32 %v411, 0.0
    %v454 = vmax.f32 %v416, 0.0
    %v455 = vmax.f32 %v419, 0.0
    %v456 = vmax.f32 %v424, 0.0
    %v457 = vmax.f32 %v427, 0.0
    %v458 = vmax.f32 %v432, 0.0
    %v459 = vmax.f32 %v435, 0.0
    %v460 = vmax.f32 %v440, 0.0
    %v461 = vmax.f32 %v443, 0.0
    %v462 = vpack.c.bf16 %v447, %v446
    %v463 = vpack.c.bf16 %v449, %v448
    %v464 = vpack.c.bf16 %v451, %v450
    %v465 = vpack.c.bf16 %v453, %v452
    %v466 = vpack.c.bf16 %v455, %v454
    %v467 = vpack.c.bf16 %v457, %v456
    %v468 = vpack.c.bf16 %v459, %v458
    %v469 = vpack.c.bf16 %v461, %v460
    %v471 = vlaneseq
    %v472 = vshrl.u32 %v471, 7
    %v473 = vsub.s32 0, %v472
    %v474 = vrot.slane %v246, %v473
    %v484 = vunpack.c.l.b16 %v238
    %v485 = vunpack.c.l.b16 %v239
    %v486 = vunpack.c.l.b16 %v240
    %v487 = vunpack.c.l.b16 %v241
    %v488 = vunpack.c.l.b16 %v242
    %v489 = vunpack.c.l.b16 %v243
    %v490 = vunpack.c.l.b16 %v244
    %v491 = vunpack.c.l.b16 %v245
    %v492 = vpack.c.b16 %v485, %v484
    %v493 = vpack.c.b16 %v487, %v486
    %v494 = vpack.c.b16 %v489, %v488
    %v495 = vpack.c.b16 %v491, %v490
    %v501 = vsel %vm324, %v462, 0
    %v504 = vsel %vm324, %v463, 0
    %v507 = vsel %vm324, %v464, 0
    %v510 = vsel %vm324, %v465, 0
    %v513 = vsel %vm324, %v466, 0
    %v516 = vsel %vm324, %v467, 0
    %v519 = vsel %vm324, %v468, 0
    %v522 = vsel %vm324, %v469, 0
    %524 = vmatprep.subr.bf16.mxu0 0
    %525 = vmatpush1.bf16.msra.mxu0 %v492
    %526 = vmatprep.subr.bf16.mxu0 0
    %527 = vmatpush1.bf16.msra.mxu0 %v493
    %528 = vmatprep.subr.bf16.mxu0 0
    %529 = vmatpush1.bf16.msra.mxu0 %v494
    %530 = vmatprep.subr.bf16.mxu0 0
    %531 = vmatpush1.bf16.msra.mxu0 %v495
    %532 = vmatprep.subr.bf16.mxu0 0
    %533 = vmatpush1.bf16.msra.mxu0 0
    %534 = vmatprep.subr.bf16.mxu0 0
    %535 = vmatpush1.bf16.msra.mxu0 0
    %536 = vmatprep.subr.bf16.mxu0 0
    %537 = vmatpush1.bf16.msra.mxu0 0
    %538 = vmatprep.subr.bf16.mxu0 0
    %539 = vmatpush1.bf16.msra.mxu0 0
    %540 = vmatprep.subr.bf16.mxu0 0
    %541 = vmatpush1.bf16.msra.mxu0 0
    %542 = vmatprep.subr.bf16.mxu0 0
    %543 = vmatpush1.bf16.msra.mxu0 0
    %544 = vmatprep.subr.bf16.mxu0 0
    %545 = vmatpush1.bf16.msra.mxu0 0
    %546 = vmatprep.subr.bf16.mxu0 0
    %547 = vmatpush1.bf16.msra.mxu0 0
    %548 = vmatprep.subr.bf16.mxu0 0
    %549 = vmatpush1.bf16.msra.mxu0 0
    %550 = vmatprep.subr.bf16.mxu0 0
    %551 = vmatpush1.bf16.msra.mxu0 0
    %552 = vmatprep.subr.bf16.mxu0 0
    %553 = vmatpush1.bf16.msra.mxu0 0
    %554 = vmatprep.subr.bf16.mxu0 0
    %555 = vmatpush1.bf16.msra.mxu0 0
    %556 = vmatprep.mubr.bf16.mxu0 0
    %557 = vmatmul.mubr.bf16.gmra.mrb[0].mxu0 %v501
    %v558 = vpop.f32.mrb[0].mxu0
    %v559 = vadd.f32 %v474, %v558
    %v560 = vpop.f32.mrb[0].mxu0
    %v561 = vpop.f32.mrb[0].mxu0
    %v562 = vadd.f32 %v474, %v561
    %v563 = vpop.f32.mrb[0].mxu0
    %564 = vmatprep.mubr.bf16.mxu0 0
    %565 = vmatmul.mubr.bf16.gmra.mrb[0].mxu0 %v504
    %v566 = vpop.f32.mrb[0].mxu0
    %v567 = vadd.f32 %v474, %v566
    %v568 = vpop.f32.mrb[0].mxu0
    %v569 = vpop.f32.mrb[0].mxu0
    %v570 = vadd.f32 %v474, %v569
    %v571 = vpop.f32.mrb[0].mxu0
    %572 = vmatprep.mubr.bf16.mxu0 0
    %573 = vmatmul.mubr.bf16.gmra.mrb[0].mxu0 %v507
    %v574 = vpop.f32.mrb[0].mxu0
    %v575 = vadd.f32 %v474, %v574
    %v576 = vpop.f32.mrb[0].mxu0
    %v577 = vpop.f32.mrb[0].mxu0
    %v578 = vadd.f32 %v474, %v577
    %v579 = vpop.f32.mrb[0].mxu0
    %580 = vmatprep.mubr.bf16.mxu0 0
    %581 = vmatmul.mubr.bf16.gmra.mrb[0].mxu0 %v510
    %v582 = vpop.f32.mrb[0].mxu0
    %v583 = vadd.f32 %v474, %v582
    %v584 = vpop.f32.mrb[0].mxu0
    %v585 = vpop.f32.mrb[0].mxu0
    %v586 = vadd.f32 %v474, %v585
    %v587 = vpop.f32.mrb[0].mxu0
    %588 = vmatprep.mubr.bf16.mxu0 0
    %589 = vmatmul.mubr.bf16.gmra.mrb[0].mxu0 %v513
    %v590 = vpop.f32.mrb[0].mxu0
    %v591 = vadd.f32 %v474, %v590
    %v592 = vpop.f32.mrb[0].mxu0
    %v593 = vpop.f32.mrb[0].mxu0
    %v594 = vadd.f32 %v474, %v593
    %v595 = vpop.f32.mrb[0].mxu0
    %596 = vmatprep.mubr.bf16.mxu0 0
    %597 = vmatmul.mubr.bf16.gmra.mrb[0].mxu0 %v516
    %v598 = vpop.f32.mrb[0].mxu0
    %v599 = vadd.f32 %v474, %v598
    %v600 = vpop.f32.mrb[0].mxu0
    %v601 = vpop.f32.mrb[0].mxu0
    %v602 = vadd.f32 %v474, %v601
    %v603 = vpop.f32.mrb[0].mxu0
    %604 = vmatprep.mubr.bf16.mxu0 0
    %605 = vmatmul.mubr.bf16.gmra.mrb[0].mxu0 %v519
    %v606 = vpop.f32.mrb[0].mxu0
    %v607 = vadd.f32 %v474, %v606
    %v608 = vpop.f32.mrb[0].mxu0
    %v609 = vpop.f32.mrb[0].mxu0
    %v610 = vadd.f32 %v474, %v609
    %v611 = vpop.f32.mrb[0].mxu0
    %612 = vmatprep.mubr.bf16.mxu0 0
    %613 = vmatmul.mubr.bf16.gmra.mrb[0].mxu0 %v522
    %v614 = vpop.f32.mrb[0].mxu0
    %v615 = vadd.f32 %v474, %v614
    %v616 = vpop.f32.mrb[0].mxu0
    %v617 = vpop.f32.mrb[0].mxu0
    %v618 = vadd.f32 %v474, %v617
    %v619 = vpop.f32.mrb[0].mxu0
    %620 = vdwg.mxu0
    %v621 = vmax.f32 %v559, 0.0
    %v622 = vmax.f32 %v562, 0.0
    %v623 = vmax.f32 %v567, 0.0
    %v624 = vmax.f32 %v570, 0.0
    %v625 = vmax.f32 %v575, 0.0
    %v626 = vmax.f32 %v578, 0.0
    %v627 = vmax.f32 %v583, 0.0
    %v628 = vmax.f32 %v586, 0.0
    %v629 = vmax.f32 %v591, 0.0
    %v630 = vmax.f32 %v594, 0.0
    %v631 = vmax.f32 %v599, 0.0
    %v632 = vmax.f32 %v602, 0.0
    %v633 = vmax.f32 %v607, 0.0
    %v634 = vmax.f32 %v610, 0.0
    %v635 = vmax.f32 %v615, 0.0
    %v636 = vmax.f32 %v618, 0.0
    %v638 = vlaneseq
    %v639 = vshrl.u32 %v638, 7
    %v640 = vsub.s32 0, %v639
    %v641 = vrot.slane %v247, %v640
    %v643 = vmul.f32 %v621, %v641
    %v644 = vmul.f32 %v622, %v641
    %v645 = vmul.f32 %v623, %v641
    %v646 = vmul.f32 %v624, %v641
    %v647 = vmul.f32 %v625, %v641
    %v648 = vmul.f32 %v626, %v641
    %v649 = vmul.f32 %v627, %v641
    %v650 = vmul.f32 %v628, %v641
    %v651 = vmul.f32 %v629, %v641
    %v652 = vmul.f32 %v630, %v641
    %v653 = vmul.f32 %v631, %v641
    %v654 = vmul.f32 %v632, %v641
    %v655 = vmul.f32 %v633, %v641
    %v656 = vmul.f32 %v634, %v641
    %v657 = vmul.f32 %v635, %v641
    %v658 = vmul.f32 %v636, %v641
    %v659 = vsel %vm324, %v643, 0.0
    %660 = vadd.xlane.f32.xlu0 %v659
    %v661 = vpop.xlane.xlu0 %660
    %v662 = vsel %vm324, %v644, 0.0
    %663 = vadd.xlane.f32.xlu0 %v662
    %v664 = vpop.xlane.xlu0 %663
    %v665 = vsel %vm324, %v645, 0.0
    %666 = vadd.xlane.f32.xlu0 %v665
    %v667 = vpop.xlane.xlu0 %666
    %v668 = vsel %vm324, %v646, 0.0
    %669 = vadd.xlane.f32.xlu0 %v668
    %v670 = vpop.xlane.xlu0 %669
    %v671 = vsel %vm324, %v647, 0.0
    %672 = vadd.xlane.f32.xlu0 %v671
    %v673 = vpop.xlane.xlu0 %672
    %v674 = vsel %vm324, %v648, 0.0
    %675 = vadd.xlane.f32.xlu0 %v674
    %v676 = vpop.xlane.xlu0 %675
    %v677 = vsel %vm324, %v649, 0.0
    %678 = vadd.xlane.f32.xlu0 %v677
    %v679 = vpop.xlane.xlu0 %678
    %v680 = vsel %vm324, %v650, 0.0
    %681 = vadd.xlane.f32.xlu0 %v680
    %v682 = vpop.xlane.xlu0 %681
    %v683 = vsel %vm324, %v651, 0.0
    %684 = vadd.xlane.f32.xlu0 %v683
    %v685 = vpop.xlane.xlu0 %684
    %v686 = vsel %vm324, %v652, 0.0
    %687 = vadd.xlane.f32.xlu0 %v686
    %v688 = vpop.xlane.xlu0 %687
    %v689 = vsel %vm324, %v653, 0.0
    %690 = vadd.xlane.f32.xlu0 %v689
    %v691 = vpop.xlane.xlu0 %690
    %v692 = vsel %vm324, %v654, 0.0
    %693 = vadd.xlane.f32.xlu0 %v692
    %v694 = vpop.xlane.xlu0 %693
    %v695 = vsel %vm324, %v655, 0.0
    %696 = vadd.xlane.f32.xlu0 %v695
    %v697 = vpop.xlane.xlu0 %696
    %v698 = vsel %vm324, %v656, 0.0
    %699 = vadd.xlane.f32.xlu0 %v698
    %v700 = vpop.xlane.xlu0 %699
    %v701 = vsel %vm324, %v657, 0.0
    %702 = vadd.xlane.f32.xlu0 %v701
    %v703 = vpop.xlane.xlu0 %702
    %v704 = vsel %vm324, %v658, 0.0
    %705 = vadd.xlane.f32.xlu0 %v704
    %v706 = vpop.xlane.xlu0 %705
    %v707 = vstv %s248
    %v708 = vadd.f32 %v661, %v707
    %v709 = vadd.f32 %v664, %v707
    %v710 = vadd.f32 %v667, %v707
    %v711 = vadd.f32 %v670, %v707
    %v712 = vadd.f32 %v673, %v707
    %v713 = vadd.f32 %v676, %v707
    %v714 = vadd.f32 %v679, %v707
    %v715 = vadd.f32 %v682, %v707
    %v716 = vadd.f32 %v685, %v707
    %v717 = vadd.f32 %v688, %v707
    %v718 = vadd.f32 %v691, %v707
    %v719 = vadd.f32 %v694, %v707
    %v720 = vadd.f32 %v697, %v707
    %v721 = vadd.f32 %v700, %v707
    %v722 = vadd.f32 %v703, %v707
    %v723 = vadd.f32 %v706, %v707
    %v740 = vlaneseq
    %v741 = vand.u32 %v740, 127
    %v742 = vlaneseq
    %v743 = vshrl.u32 %v742, 7
    %v744 = vsub.s32 %v741, %v743
    %v745 = vrot.slane %v708, %v744
    %v746 = vadd.s32 %v741, 4294967288
    %v747 = vlaneseq
    %v748 = vshrl.u32 %v747, 7
    %v749 = vsub.s32 %v746, %v748
    %v750 = vrot.slane %v709, %v749
    %vm751 = vcmask 130112
    %v752 = vsel %vm751, %v750, %v745
    %v753 = vadd.s32 %v741, 4294967280
    %v754 = vlaneseq
    %v755 = vshrl.u32 %v754, 7
    %v756 = vsub.s32 %v753, %v755
    %v757 = vrot.slane %v710, %v756
    %vm758 = vcmask 195712
    %v759 = vsel %vm758, %v757, %v752
    %v760 = vadd.s32 %v741, 4294967272
    %v761 = vlaneseq
    %v762 = vshrl.u32 %v761, 7
    %v763 = vsub.s32 %v760, %v762
    %v764 = vrot.slane %v711, %v763
    %vm765 = vcmask 261312
    %v766 = vsel %vm765, %v764, %v759
    %v767 = vadd.s32 %v741, 4294967264
    %v768 = vlaneseq
    %v769 = vshrl.u32 %v768, 7
    %v770 = vsub.s32 %v767, %v769
    %v771 = vrot.slane %v712, %v770
    %vm772 = vcmask 326912
    %v773 = vsel %vm772, %v771, %v766
    %v774 = vadd.s32 %v741, 4294967256
    %v775 = vlaneseq
    %v776 = vshrl.u32 %v775, 7
    %v777 = vsub.s32 %v774, %v776
    %v778 = vrot.slane %v713, %v777
    %vm779 = vcmask 392512
    %v780 = vsel %vm779, %v778, %v773
    %v781 = vadd.s32 %v741, 4294967248
    %v782 = vlaneseq
    %v783 = vshrl.u32 %v782, 7
    %v784 = vsub.s32 %v781, %v783
    %v785 = vrot.slane %v714, %v784
    %vm786 = vcmask 458112
    %v787 = vsel %vm786, %v785, %v780
    %v788 = vadd.s32 %v741, 4294967240
    %v789 = vlaneseq
    %v790 = vshrl.u32 %v789, 7
    %v791 = vsub.s32 %v788, %v790
    %v792 = vrot.slane %v715, %v791
    %vm793 = vcmask 523712
    %v794 = vsel %vm793, %v792, %v787
    %v795 = vadd.s32 %v741, 4294967232
    %v796 = vlaneseq
    %v797 = vshrl.u32 %v796, 7
    %v798 = vsub.s32 %v795, %v797
    %v799 = vrot.slane %v716, %v798
    %vm800 = vcmask 589312
    %v801 = vsel %vm800, %v799, %v794
    %v802 = vadd.s32 %v741, 4294967224
    %v803 = vlaneseq
    %v804 = vshrl.u32 %v803, 7
    %v805 = vsub.s32 %v802, %v804
    %v806 = vrot.slane %v717, %v805
    %vm807 = vcmask 654912
    %v808 = vsel %vm807, %v806, %v801
    %v809 = vadd.s32 %v741, 4294967216
    %v810 = vlaneseq
    %v811 = vshrl.u32 %v810, 7
    %v812 = vsub.s32 %v809, %v811
    %v813 = vrot.slane %v718, %v812
    %vm814 = vcmask 720512
    %v815 = vsel %vm814, %v813, %v808
    %v816 = vadd.s32 %v741, 4294967208
    %v817 = vlaneseq
    %v818 = vshrl.u32 %v817, 7
    %v819 = vsub.s32 %v816, %v818
    %v820 = vrot.slane %v719, %v819
    %vm821 = vcmask 786112
    %v822 = vsel %vm821, %v820, %v815
    %v823 = vadd.s32 %v741, 4294967200
    %v824 = vlaneseq
    %v825 = vshrl.u32 %v824, 7
    %v826 = vsub.s32 %v823, %v825
    %v827 = vrot.slane %v720, %v826
    %vm828 = vcmask 851712
    %v829 = vsel %vm828, %v827, %v822
    %v830 = vadd.s32 %v741, 4294967192
    %v831 = vlaneseq
    %v832 = vshrl.u32 %v831, 7
    %v833 = vsub.s32 %v830, %v832
    %v834 = vrot.slane %v721, %v833
    %vm835 = vcmask 917312
    %v836 = vsel %vm835, %v834, %v829
    %v837 = vadd.s32 %v741, 4294967184
    %v838 = vlaneseq
    %v839 = vshrl.u32 %v838, 7
    %v840 = vsub.s32 %v837, %v839
    %v841 = vrot.slane %v722, %v840
    %vm842 = vcmask 982912
    %v843 = vsel %vm842, %v841, %v836
    %v844 = vadd.s32 %v741, 4294967176
    %v845 = vlaneseq
    %v846 = vshrl.u32 %v845, 7
    %v847 = vsub.s32 %v844, %v846
    %v848 = vrot.slane %v723, %v847
    %vm849 = vcmask 1048512
    %v850 = vsel %vm849, %v848, %v843
    %852 = vst [vmem:[#allocation3] sm:$0x1] %v850
    %v853 = vld [vmem:[%s1 + $0x1] sm:$0x1]
    %v854 = vlaneseq
    %v855 = vshrl.u32 %v854, 7
    %v856 = vsub.s32 0, %v855
    %v857 = vrot.slane %v853, %v856
    %v858 = vadd.f32 %v167, %v857
    %v859 = vadd.f32 %v170, %v857
    %v860 = vadd.f32 %v175, %v857
    %v861 = vadd.f32 %v178, %v857
    %v862 = vadd.f32 %v183, %v857
    %v863 = vadd.f32 %v186, %v857
    %v864 = vadd.f32 %v191, %v857
    %v865 = vadd.f32 %v194, %v857
    %v866 = vadd.f32 %v199, %v857
    %v867 = vadd.f32 %v202, %v857
    %v868 = vadd.f32 %v207, %v857
    %v869 = vadd.f32 %v210, %v857
    %v870 = vadd.f32 %v215, %v857
    %v871 = vadd.f32 %v218, %v857
    %v872 = vadd.f32 %v223, %v857
    %v873 = vadd.f32 %v226, %v857
    %v874 = vmax.f32 %v858, 0.0
    %v875 = vmax.f32 %v859, 0.0
    %v876 = vmax.f32 %v860, 0.0
    %v877 = vmax.f32 %v861, 0.0
    %v878 = vmax.f32 %v862, 0.0
    %v879 = vmax.f32 %v863, 0.0
    %v880 = vmax.f32 %v864, 0.0
    %v881 = vmax.f32 %v865, 0.0
    %v882 = vmax.f32 %v866, 0.0
    %v883 = vmax.f32 %v867, 0.0
    %v884 = vmax.f32 %v868, 0.0
    %v885 = vmax.f32 %v869, 0.0
    %v886 = vmax.f32 %v870, 0.0
    %v887 = vmax.f32 %v871, 0.0
    %v888 = vmax.f32 %v872, 0.0
    %v889 = vmax.f32 %v873, 0.0
    %v890 = vpack.c.bf16 %v875, %v874
    %v891 = vpack.c.bf16 %v877, %v876
    %v892 = vpack.c.bf16 %v879, %v878
    %v893 = vpack.c.bf16 %v881, %v880
    %v894 = vpack.c.bf16 %v883, %v882
    %v895 = vpack.c.bf16 %v885, %v884
    %v896 = vpack.c.bf16 %v887, %v886
    %v897 = vpack.c.bf16 %v889, %v888
    %v899 = vsel %vm324, %v890, 0
    %v902 = vsel %vm324, %v891, 0
    %v905 = vsel %vm324, %v892, 0
    %v908 = vsel %vm324, %v893, 0
    %v911 = vsel %vm324, %v894, 0
    %v914 = vsel %vm324, %v895, 0
    %v917 = vsel %vm324, %v896, 0
    %v920 = vsel %vm324, %v897, 0
    %922 = vmatprep.subr.bf16.mxu0 0
    %923 = vmatpush1.bf16.msra.mxu0 %v316
    %924 = vmatprep.subr.bf16.mxu0 0
    %925 = vmatpush1.bf16.msra.mxu0 %v317
    %926 = vmatprep.subr.bf16.mxu0 0
    %927 = vmatpush1.bf16.msra.mxu0 %v318
    %928 = vmatprep.subr.bf16.mxu0 0
    %929 = vmatpush1.bf16.msra.mxu0 %v319
    %930 = vmatprep.subr.bf16.mxu0 0
    %931 = vmatpush1.bf16.msra.mxu0 0
    %932 = vmatprep.subr.bf16.mxu0 0
    %933 = vmatpush1.bf16.msra.mxu0 0
    %934 = vmatprep.subr.bf16.mxu0 0
    %935 = vmatpush1.bf16.msra.mxu0 0
    %936 = vmatprep.subr.bf16.mxu0 0
    %937 = vmatpush1.bf16.msra.mxu0 0
    %938 = vmatprep.subr.bf16.mxu0 0
    %939 = vmatpush1.bf16.msra.mxu0 0
    %940 = vmatprep.subr.bf16.mxu0 0
    %941 = vmatpush1.bf16.msra.mxu0 0
    %942 = vmatprep.subr.bf16.mxu0 0
    %943 = vmatpush1.bf16.msra.mxu0 0
    %944 = vmatprep.subr.bf16.mxu0 0
    %945 = vmatpush1.bf16.msra.mxu0 0
    %946 = vmatprep.subr.bf16.mxu0 0
    %947 = vmatpush1.bf16.msra.mxu0 0
    %948 = vmatprep.subr.bf16.mxu0 0
    %949 = vmatpush1.bf16.msra.mxu0 0
    %950 = vmatprep.subr.bf16.mxu0 0
    %951 = vmatpush1.bf16.msra.mxu0 0
    %952 = vmatprep.subr.bf16.mxu0 0
    %953 = vmatpush1.bf16.msra.mxu0 0
    %954 = vmatprep.mubr.bf16.mxu0 0
    %955 = vmatmul.mubr.bf16.gmra.mrb[0].mxu0 %v899
    %v956 = vpop.f32.mrb[0].mxu0
    %v957 = vadd.f32 %v298, %v956
    %v958 = vpop.f32.mrb[0].mxu0
    %v959 = vpop.f32.mrb[0].mxu0
    %v960 = vadd.f32 %v298, %v959
    %v961 = vpop.f32.mrb[0].mxu0
    %962 = vmatprep.mubr.bf16.mxu0 0
    %963 = vmatmul.mubr.bf16.gmra.mrb[0].mxu0 %v902
    %v964 = vpop.f32.mrb[0].mxu0
    %v965 = vadd.f32 %v298, %v964
    %v966 = vpop.f32.mrb[0].mxu0
    %v967 = vpop.f32.mrb[0].mxu0
    %v968 = vadd.f32 %v298, %v967
    %v969 = vpop.f32.mrb[0].mxu0
    %970 = vmatprep.mubr.bf16.mxu0 0
    %971 = vmatmul.mubr.bf16.gmra.mrb[0].mxu0 %v905
    %v972 = vpop.f32.mrb[0].mxu0
    %v973 = vadd.f32 %v298, %v972
    %v974 = vpop.f32.mrb[0].mxu0
    %v975 = vpop.f32.mrb[0].mxu0
    %v976 = vadd.f32 %v298, %v975
    %v977 = vpop.f32.mrb[0].mxu0
    %978 = vmatprep.mubr.bf16.mxu0 0
    %979 = vmatmul.mubr.bf16.gmra.mrb[0].mxu0 %v908
    %v980 = vpop.f32.mrb[0].mxu0
    %v981 = vadd.f32 %v298, %v980
    %v982 = vpop.f32.mrb[0].mxu0
    %v983 = vpop.f32.mrb[0].mxu0
    %v984 = vadd.f32 %v298, %v983
    %v985 = vpop.f32.mrb[0].mxu0
    %986 = vmatprep.mubr.bf16.mxu0 0
    %987 = vmatmul.mubr.bf16.gmra.mrb[0].mxu0 %v911
    %v988 = vpop.f32.mrb[0].mxu0
    %v989 = vadd.f32 %v298, %v988
    %v990 = vpop.f32.mrb[0].mxu0
    %v991 = vpop.f32.mrb[0].mxu0
    %v992 = vadd.f32 %v298, %v991
    %v993 = vpop.f32.mrb[0].mxu0
    %994 = vmatprep.mubr.bf16.mxu0 0
    %995 = vmatmul.mubr.bf16.gmra.mrb[0].mxu0 %v914
    %v996 = vpop.f32.mrb[0].mxu0
    %v997 = vadd.f32 %v298, %v996
    %v998 = vpop.f32.mrb[0].mxu0
    %v999 = vpop.f32.mrb[0].mxu0
    %v1000 = vadd.f32 %v298, %v999
    %v1001 = vpop.f32.mrb[0].mxu0
    %1002 = vmatprep.mubr.bf16.mxu0 0
    %1003 = vmatmul.mubr.bf16.gmra.mrb[0].mxu0 %v917
    %v1004 = vpop.f32.mrb[0].mxu0
    %v1005 = vadd.f32 %v298, %v1004
    %v1006 = vpop.f32.mrb[0].mxu0
    %v1007 = vpop.f32.mrb[0].mxu0
    %v1008 = vadd.f32 %v298, %v1007
    %v1009 = vpop.f32.mrb[0].mxu0
    %1010 = vmatprep.mubr.bf16.mxu0 0
    %1011 = vmatmul.mubr.bf16.gmra.mrb[0].mxu0 %v920
    %v1012 = vpop.f32.mrb[0].mxu0
    %v1013 = vadd.f32 %v298, %v1012
    %v1014 = vpop.f32.mrb[0].mxu0
    %v1015 = vpop.f32.mrb[0].mxu0
    %v1016 = vadd.f32 %v298, %v1015
    %v1017 = vpop.f32.mrb[0].mxu0
    %1018 = vdwg.mxu0
    %v1019 = vmax.f32 %v957, 0.0
    %v1020 = vmax.f32 %v960, 0.0
    %v1021 = vmax.f32 %v965, 0.0
    %v1022 = vmax.f32 %v968, 0.0
    %v1023 = vmax.f32 %v973, 0.0
    %v1024 = vmax.f32 %v976, 0.0
    %v1025 = vmax.f32 %v981, 0.0
    %v1026 = vmax.f32 %v984, 0.0
    %v1027 = vmax.f32 %v989, 0.0
    %v1028 = vmax.f32 %v992, 0.0
    %v1029 = vmax.f32 %v997, 0.0
    %v1030 = vmax.f32 %v1000, 0.0
    %v1031 = vmax.f32 %v1005, 0.0
    %v1032 = vmax.f32 %v1008, 0.0
    %v1033 = vmax.f32 %v1013, 0.0
    %v1034 = vmax.f32 %v1016, 0.0
    %v1035 = vpack.c.bf16 %v1020, %v1019
    %v1036 = vpack.c.bf16 %v1022, %v1021
    %v1037 = vpack.c.bf16 %v1024, %v1023
    %v1038 = vpack.c.bf16 %v1026, %v1025
    %v1039 = vpack.c.bf16 %v1028, %v1027
    %v1040 = vpack.c.bf16 %v1030, %v1029
    %v1041 = vpack.c.bf16 %v1032, %v1031
    %v1042 = vpack.c.bf16 %v1034, %v1033
    %v1044 = vsel %vm324, %v1035, 0
    %v1047 = vsel %vm324, %v1036, 0
    %v1050 = vsel %vm324, %v1037, 0
    %v1053 = vsel %vm324, %v1038, 0
    %v1056 = vsel %vm324, %v1039, 0
    %v1059 = vsel %vm324, %v1040, 0
    %v1062 = vsel %vm324, %v1041, 0
    %v1065 = vsel %vm324, %v1042, 0
    %1067 = vmatprep.subr.bf16.mxu0 0
    %1068 = vmatpush1.bf16.msra.mxu0 %v492
    %1069 = vmatprep.subr.bf16.mxu0 0
    %1070 = vmatpush1.bf16.msra.mxu0 %v493
    %1071 = vmatprep.subr.bf16.mxu0 0
    %1072 = vmatpush1.bf16.msra.mxu0 %v494
    %1073 = vmatprep.subr.bf16.mxu0 0
    %1074 = vmatpush1.bf16.msra.mxu0 %v495
    %1075 = vmatprep.subr.bf16.mxu0 0
    %1076 = vmatpush1.bf16.msra.mxu0 0
    %1077 = vmatprep.subr.bf16.mxu0 0
    %1078 = vmatpush1.bf16.msra.mxu0 0
    %1079 = vmatprep.subr.bf16.mxu0 0
    %1080 = vmatpush1.bf16.msra.mxu0 0
    %1081 = vmatprep.subr.bf16.mxu0 0
    %1082 = vmatpush1.bf16.msra.mxu0 0
    %1083 = vmatprep.subr.bf16.mxu0 0
    %1084 = vmatpush1.bf16.msra.mxu0 0
    %1085 = vmatprep.subr.bf16.mxu0 0
    %1086 = vmatpush1.bf16.msra.mxu0 0
    %1087 = vmatprep.subr.bf16.mxu0 0
    %1088 = vmatpush1.bf16.msra.mxu0 0
    %1089 = vmatprep.subr.bf16.mxu0 0
    %1090 = vmatpush1.bf16.msra.mxu0 0
    %1091 = vmatprep.subr.bf16.mxu0 0
    %1092 = vmatpush1.bf16.msra.mxu0 0
    %1093 = vmatprep.subr.bf16.mxu0 0
    %1094 = vmatpush1.bf16.msra.mxu0 0
    %1095 = vmatprep.subr.bf16.mxu0 0
    %1096 = vmatpush1.bf16.msra.mxu0 0
    %1097 = vmatprep.subr.bf16.mxu0 0
    %1098 = vmatpush1.bf16.msra.mxu0 0
    %1099 = vmatprep.mubr.bf16.mxu0 0
    %1100 = vmatmul.mubr.bf16.gmra.mrb[0].mxu0 %v1044
    %v1101 = vpop.f32.mrb[0].mxu0
    %v1102 = vadd.f32 %v474, %v1101
    %v1103 = vpop.f32.mrb[0].mxu0
    %v1104 = vpop.f32.mrb[0].mxu0
    %v1105 = vadd.f32 %v474, %v1104
    %v1106 = vpop.f32.mrb[0].mxu0
    %1107 = vmatprep.mubr.bf16.mxu0 0
    %1108 = vmatmul.mubr.bf16.gmra.mrb[0].mxu0 %v1047
    %v1109 = vpop.f32.mrb[0].mxu0
    %v1110 = vadd.f32 %v474, %v1109
    %v1111 = vpop.f32.mrb[0].mxu0
    %v1112 = vpop.f32.mrb[0].mxu0
    %v1113 = vadd.f32 %v474, %v1112
    %v1114 = vpop.f32.mrb[0].mxu0
    %1115 = vmatprep.mubr.bf16.mxu0 0
    %1116 = vmatmul.mubr.bf16.gmra.mrb[0].mxu0 %v1050
    %v1117 = vpop.f32.mrb[0].mxu0
    %v1118 = vadd.f32 %v474, %v1117
    %v1119 = vpop.f32.mrb[0].mxu0
    %v1120 = vpop.f32.mrb[0].mxu0
    %v1121 = vadd.f32 %v474, %v1120
    %v1122 = vpop.f32.mrb[0].mxu0
    %1123 = vmatprep.mubr.bf16.mxu0 0
    %1124 = vmatmul.mubr.bf16.gmra.mrb[0].mxu0 %v1053
    %v1125 = vpop.f32.mrb[0].mxu0
    %v1126 = vadd.f32 %v474, %v1125
    %v1127 = vpop.f32.mrb[0].mxu0
    %v1128 = vpop.f32.mrb[0].mxu0
    %v1129 = vadd.f32 %v474, %v1128
    %v1130 = vpop.f32.mrb[0].mxu0
    %1131 = vmatprep.mubr.bf16.mxu0 0
    %1132 = vmatmul.mubr.bf16.gmra.mrb[0].mxu0 %v1056
    %v1133 = vpop.f32.mrb[0].mxu0
    %v1134 = vadd.f32 %v474, %v1133
    %v1135 = vpop.f32.mrb[0].mxu0
    %v1136 = vpop.f32.mrb[0].mxu0
    %v1137 = vadd.f32 %v474, %v1136
    %v1138 = vpop.f32.mrb[0].mxu0
    %1139 = vmatprep.mubr.bf16.mxu0 0
    %1140 = vmatmul.mubr.bf16.gmra.mrb[0].mxu0 %v1059
    %v1141 = vpop.f32.mrb[0].mxu0
    %v1142 = vadd.f32 %v474, %v1141
    %v1143 = vpop.f32.mrb[0].mxu0
    %v1144 = vpop.f32.mrb[0].mxu0
    %v1145 = vadd.f32 %v474, %v1144
    %v1146 = vpop.f32.mrb[0].mxu0
    %1147 = vmatprep.mubr.bf16.mxu0 0
    %1148 = vmatmul.mubr.bf16.gmra.mrb[0].mxu0 %v1062
    %v1149 = vpop.f32.mrb[0].mxu0
    %v1150 = vadd.f32 %v474, %v1149
    %v1151 = vpop.f32.mrb[0].mxu0
    %v1152 = vpop.f32.mrb[0].mxu0
    %v1153 = vadd.f32 %v474, %v1152
    %v1154 = vpop.f32.mrb[0].mxu0
    %1155 = vmatprep.mubr.bf16.mxu0 0
    %1156 = vmatmul.mubr.bf16.gmra.mrb[0].mxu0 %v1065
    %v1157 = vpop.f32.mrb[0].mxu0
    %v1158 = vadd.f32 %v474, %v1157
    %v1159 = vpop.f32.mrb[0].mxu0
    %v1160 = vpop.f32.mrb[0].mxu0
    %v1161 = vadd.f32 %v474, %v1160
    %v1162 = vpop.f32.mrb[0].mxu0
    %1163 = vdwg.mxu0
    %v1164 = vmax.f32 %v1102, 0.0
    %v1165 = vmax.f32 %v1105, 0.0
    %v1166 = vmax.f32 %v1110, 0.0
    %v1167 = vmax.f32 %v1113, 0.0
    %v1168 = vmax.f32 %v1118, 0.0
    %v1169 = vmax.f32 %v1121, 0.0
    %v1170 = vmax.f32 %v1126, 0.0
    %v1171 = vmax.f32 %v1129, 0.0
    %v1172 = vmax.f32 %v1134, 0.0
    %v1173 = vmax.f32 %v1137, 0.0
    %v1174 = vmax.f32 %v1142, 0.0
    %v1175 = vmax.f32 %v1145, 0.0
    %v1176 = vmax.f32 %v1150, 0.0
    %v1177 = vmax.f32 %v1153, 0.0
    %v1178 = vmax.f32 %v1158, 0.0
    %v1179 = vmax.f32 %v1161, 0.0
    %v1180 = vmul.f32 %v1164, %v641
    %v1181 = vmul.f32 %v1165, %v641
    %v1182 = vmul.f32 %v1166, %v641
    %v1183 = vmul.f32 %v1167, %v641
    %v1184 = vmul.f32 %v1168, %v641
    %v1185 = vmul.f32 %v1169, %v641
    %v1186 = vmul.f32 %v1170, %v641
    %v1187 = vmul.f32 %v1171, %v641
    %v1188 = vmul.f32 %v1172, %v641
    %v1189 = vmul.f32 %v1173, %v641
    %v1190 = vmul.f32 %v1174, %v641
    %v1191 = vmul.f32 %v1175, %v641
    %v1192 = vmul.f32 %v1176, %v641
    %v1193 = vmul.f32 %v1177, %v641
    %v1194 = vmul.f32 %v1178, %v641
    %v1195 = vmul.f32 %v1179, %v641
    %v1196 = vsel %vm324, %v1180, 0.0
    %1197 = vadd.xlane.f32.xlu0 %v1196
    %v1198 = vpop.xlane.xlu0 %1197
    %v1199 = vsel %vm324, %v1181, 0.0
    %1200 = vadd.xlane.f32.xlu0 %v1199
    %v1201 = vpop.xlane.xlu0 %1200
    %v1202 = vsel %vm324, %v1182, 0.0
    %1203 = vadd.xlane.f32.xlu0 %v1202
    %v1204 = vpop.xlane.xlu0 %1203
    %v1205 = vsel %vm324, %v1183, 0.0
    %1206 = vadd.xlane.f32.xlu0 %v1205
    %v1207 = vpop.xlane.xlu0 %1206
    %v1208 = vsel %vm324, %v1184, 0.0
    %1209 = vadd.xlane.f32.xlu0 %v1208
    %v1210 = vpop.xlane.xlu0 %1209
    %v1211 = vsel %vm324, %v1185, 0.0
    %1212 = vadd.xlane.f32.xlu0 %v1211
    %v1213 = vpop.xlane.xlu0 %1212
    %v1214 = vsel %vm324, %v1186, 0.0
    %1215 = vadd.xlane.f32.xlu0 %v1214
    %v1216 = vpop.xlane.xlu0 %1215
    %v1217 = vsel %vm324, %v1187, 0.0
    %1218 = vadd.xlane.f32.xlu0 %v1217
    %v1219 = vpop.xlane.xlu0 %1218
    %v1220 = vsel %vm324, %v1188, 0.0
    %1221 = vadd.xlane.f32.xlu0 %v1220
    %v1222 = vpop.xlane.xlu0 %1221
    %v1223 = vsel %vm324, %v1189, 0.0
    %1224 = vadd.xlane.f32.xlu0 %v1223
    %v1225 = vpop.xlane.xlu0 %1224
    %v1226 = vsel %vm324, %v1190, 0.0
    %1227 = vadd.xlane.f32.xlu0 %v1226
    %v1228 = vpop.xlane.xlu0 %1227
    %v1229 = vsel %vm324, %v1191, 0.0
    %1230 = vadd.xlane.f32.xlu0 %v1229
    %v1231 = vpop.xlane.xlu0 %1230
    %v1232 = vsel %vm324, %v1192, 0.0
    %1233 = vadd.xlane.f32.xlu0 %v1232
    %v1234 = vpop.xlane.xlu0 %1233
    %v1235 = vsel %vm324, %v1193, 0.0
    %1236 = vadd.xlane.f32.xlu0 %v1235
    %v1237 = vpop.xlane.xlu0 %1236
    %v1238 = vsel %vm324, %v1194, 0.0
    %1239 = vadd.xlane.f32.xlu0 %v1238
    %v1240 = vpop.xlane.xlu0 %1239
    %v1241 = vsel %vm324, %v1195, 0.0
    %1242 = vadd.xlane.f32.xlu0 %v1241
    %v1243 = vpop.xlane.xlu0 %1242
    %v1244 = vadd.f32 %v1198, %v707
    %v1245 = vadd.f32 %v1201, %v707
    %v1246 = vadd.f32 %v1204, %v707
    %v1247 = vadd.f32 %v1207, %v707
    %v1248 = vadd.f32 %v1210, %v707
    %v1249 = vadd.f32 %v1213, %v707
    %v1250 = vadd.f32 %v1216, %v707
    %v1251 = vadd.f32 %v1219, %v707
    %v1252 = vadd.f32 %v1222, %v707
    %v1253 = vadd.f32 %v1225, %v707
    %v1254 = vadd.f32 %v1228, %v707
    %v1255 = vadd.f32 %v1231, %v707
    %v1256 = vadd.f32 %v1234, %v707
    %v1257 = vadd.f32 %v1237, %v707
    %v1258 = vadd.f32 %v1240, %v707
    %v1259 = vadd.f32 %v1243, %v707
    %v1276 = vlaneseq
    %v1277 = vshrl.u32 %v1276, 7
    %v1278 = vsub.s32 %v741, %v1277
    %v1279 = vrot.slane %v1244, %v1278
    %v1280 = vlaneseq
    %v1281 = vshrl.u32 %v1280, 7
    %v1282 = vsub.s32 %v746, %v1281
    %v1283 = vrot.slane %v1245, %v1282
    %v1284 = vsel %vm751, %v1283, %v1279
    %v1285 = vlaneseq
    %v1286 = vshrl.u32 %v1285, 7
    %v1287 = vsub.s32 %v753, %v1286
    %v1288 = vrot.slane %v1246, %v1287
    %v1289 = vsel %vm758, %v1288, %v1284
    %v1290 = vlaneseq
    %v1291 = vshrl.u32 %v1290, 7
    %v1292 = vsub.s32 %v760, %v1291
    %v1293 = vrot.slane %v1247, %v1292
    %v1294 = vsel %vm765, %v1293, %v1289
    %v1295 = vlaneseq
    %v1296 = vshrl.u32 %v1295, 7
    %v1297 = vsub.s32 %v767, %v1296
    %v1298 = vrot.slane %v1248, %v1297
    %v1299 = vsel %vm772, %v1298, %v1294
    %v1300 = vlaneseq
    %v1301 = vshrl.u32 %v1300, 7
    %v1302 = vsub.s32 %v774, %v1301
    %v1303 = vrot.slane %v1249, %v1302
    %v1304 = vsel %vm779, %v1303, %v1299
    %v1305 = vlaneseq
    %v1306 = vshrl.u32 %v1305, 7
    %v1307 = vsub.s32 %v781, %v1306
    %v1308 = vrot.slane %v1250, %v1307
    %v1309 = vsel %vm786, %v1308, %v1304
    %v1310 = vlaneseq
    %v1311 = vshrl.u32 %v1310, 7
    %v1312 = vsub.s32 %v788, %v1311
    %v1313 = vrot.slane %v1251, %v1312
    %v1314 = vsel %vm793, %v1313, %v1309
    %v1315 = vlaneseq
    %v1316 = vshrl.u32 %v1315, 7
    %v1317 = vsub.s32 %v795, %v1316
    %v1318 = vrot.slane %v1252, %v1317
    %v1319 = vsel %vm800, %v1318, %v1314
    %v1320 = vlaneseq
    %v1321 = vshrl.u32 %v1320, 7
    %v1322 = vsub.s32 %v802, %v1321
    %v1323 = vrot.slane %v1253, %v1322
    %v1324 = vsel %vm807, %v1323, %v1319
    %v1325 = vlaneseq
    %v1326 = vshrl.u32 %v1325, 7
    %v1327 = vsub.s32 %v809, %v1326
    %v1328 = vrot.slane %v1254, %v1327
    %v1329 = vsel %vm814, %v1328, %v1324
    %v1330 = vlaneseq
    %v1331 = vshrl.u32 %v1330, 7
    %v1332 = vsub.s32 %v816, %v1331
    %v1333 = vrot.slane %v1255, %v1332
    %v1334 = vsel %vm821, %v1333, %v1329
    %v1335 = vlaneseq
    %v1336 = vshrl.u32 %v1335, 7
    %v1337 = vsub.s32 %v823, %v1336
    %v1338 = vrot.slane %v1256, %v1337
    %v1339 = vsel %vm828, %v1338, %v1334
    %v1340 = vlaneseq
    %v1341 = vshrl.u32 %v1340, 7
    %v1342 = vsub.s32 %v830, %v1341
    %v1343 = vrot.slane %v1257, %v1342
    %v1344 = vsel %vm835, %v1343, %v1339
    %v1345 = vlaneseq
    %v1346 = vshrl.u32 %v1345, 7
    %v1347 = vsub.s32 %v837, %v1346
    %v1348 = vrot.slane %v1258, %v1347
    %v1349 = vsel %vm842, %v1348, %v1344
    %v1350 = vlaneseq
    %v1351 = vshrl.u32 %v1350, 7
    %v1352 = vsub.s32 %v844, %v1351
    %v1353 = vrot.slane %v1259, %v1352
    %v1354 = vsel %vm849, %v1353, %v1349
    %1356 = vst [vmem:[#allocation3 + $0x1] sm:$0x1] %v1354
    %v1357 = vld [vmem:[%s1 + $0x2] sm:$0x1]
    %v1358 = vlaneseq
    %v1359 = vshrl.u32 %v1358, 7
    %v1360 = vsub.s32 0, %v1359
    %v1361 = vrot.slane %v1357, %v1360
    %v1362 = vadd.f32 %v167, %v1361
    %v1363 = vadd.f32 %v170, %v1361
    %v1364 = vadd.f32 %v175, %v1361
    %v1365 = vadd.f32 %v178, %v1361
    %v1366 = vadd.f32 %v183, %v1361
    %v1367 = vadd.f32 %v186, %v1361
    %v1368 = vadd.f32 %v191, %v1361
    %v1369 = vadd.f32 %v194, %v1361
    %v1370 = vadd.f32 %v199, %v1361
    %v1371 = vadd.f32 %v202, %v1361
    %v1372 = vadd.f32 %v207, %v1361
    %v1373 = vadd.f32 %v210, %v1361
    %v1374 = vadd.f32 %v215, %v1361
    %v1375 = vadd.f32 %v218, %v1361
    %v1376 = vadd.f32 %v223, %v1361
    %v1377 = vadd.f32 %v226, %v1361
    %v1378 = vmax.f32 %v1362, 0.0
    %v1379 = vmax.f32 %v1363, 0.0
    %v1380 = vmax.f32 %v1364, 0.0
    %v1381 = vmax.f32 %v1365, 0.0
    %v1382 = vmax.f32 %v1366, 0.0
    %v1383 = vmax.f32 %v1367, 0.0
    %v1384 = vmax.f32 %v1368, 0.0
    %v1385 = vmax.f32 %v1369, 0.0
    %v1386 = vmax.f32 %v1370, 0.0
    %v1387 = vmax.f32 %v1371, 0.0
    %v1388 = vmax.f32 %v1372, 0.0
    %v1389 = vmax.f32 %v1373, 0.0
    %v1390 = vmax.f32 %v1374, 0.0
    %v1391 = vmax.f32 %v1375, 0.0
    %v1392 = vmax.f32 %v1376, 0.0
    %v1393 = vmax.f32 %v1377, 0.0
    %v1394 = vpack.c.bf16 %v1379, %v1378
    %v1395 = vpack.c.bf16 %v1381, %v1380
    %v1396 = vpack.c.bf16 %v1383, %v1382
    %v1397 = vpack.c.bf16 %v1385, %v1384
    %v1398 = vpack.c.bf16 %v1387, %v1386
    %v1399 = vpack.c.bf16 %v1389, %v1388
    %v1400 = vpack.c.bf16 %v1391, %v1390
    %v1401 = vpack.c.bf16 %v1393, %v1392
    %v1403 = vsel %vm324, %v1394, 0
    %v1406 = vsel %vm324, %v1395, 0
    %v1409 = vsel %vm324, %v1396, 0
    %v1412 = vsel %vm324, %v1397, 0
    %v1415 = vsel %vm324, %v1398, 0
    %v1418 = vsel %vm324, %v1399, 0
    %v1421 = vsel %vm324, %v1400, 0
    %v1424 = vsel %vm324, %v1401, 0
    %1426 = vmatprep.subr.bf16.mxu0 0
    %1427 = vmatpush1.bf16.msra.mxu0 %v316
    %1428 = vmatprep.subr.bf16.mxu0 0
    %1429 = vmatpush1.bf16.msra.mxu0 %v317
    %1430 = vmatprep.subr.bf16.mxu0 0
    %1431 = vmatpush1.bf16.msra.mxu0 %v318
    %1432 = vmatprep.subr.bf16.mxu0 0
    %1433 = vmatpush1.bf16.msra.mxu0 %v319
    %1434 = vmatprep.subr.bf16.mxu0 0
    %1435 = vmatpush1.bf16.msra.mxu0 0
    %1436 = vmatprep.subr.bf16.mxu0 0
    %1437 = vmatpush1.bf16.msra.mxu0 0
    %1438 = vmatprep.subr.bf16.mxu0 0
    %1439 = vmatpush1.bf16.msra.mxu0 0
    %1440 = vmatprep.subr.bf16.mxu0 0
    %1441 = vmatpush1.bf16.msra.mxu0 0
    %1442 = vmatprep.subr.bf16.mxu0 0
    %1443 = vmatpush1.bf16.msra.mxu0 0
    %1444 = vmatprep.subr.bf16.mxu0 0
    %1445 = vmatpush1.bf16.msra.mxu0 0
    %1446 = vmatprep.subr.bf16.mxu0 0
    %1447 = vmatpush1.bf16.msra.mxu0 0
    %1448 = vmatprep.subr.bf16.mxu0 0
    %1449 = vmatpush1.bf16.msra.mxu0 0
    %1450 = vmatprep.subr.bf16.mxu0 0
    %1451 = vmatpush1.bf16.msra.mxu0 0
    %1452 = vmatprep.subr.bf16.mxu0 0
    %1453 = vmatpush1.bf16.msra.mxu0 0
    %1454 = vmatprep.subr.bf16.mxu0 0
    %1455 = vmatpush1.bf16.msra.mxu0 0
    %1456 = vmatprep.subr.bf16.mxu0 0
    %1457 = vmatpush1.bf16.msra.mxu0 0
    %1458 = vmatprep.mubr.bf16.mxu0 0
    %1459 = vmatmul.mubr.bf16.gmra.mrb[0].mxu0 %v1403
    %v1460 = vpop.f32.mrb[0].mxu0
    %v1461 = vadd.f32 %v298, %v1460
    %v1462 = vpop.f32.mrb[0].mxu0
    %v1463 = vpop.f32.mrb[0].mxu0
    %v1464 = vadd.f32 %v298, %v1463
    %v1465 = vpop.f32.mrb[0].mxu0
    %1466 = vmatprep.mubr.bf16.mxu0 0
    %1467 = vmatmul.mubr.bf16.gmra.mrb[0].mxu0 %v1406
    %v1468 = vpop.f32.mrb[0].mxu0
    %v1469 = vadd.f32 %v298, %v1468
    %v1470 = vpop.f32.mrb[0].mxu0
    %v1471 = vpop.f32.mrb[0].mxu0
    %v1472 = vadd.f32 %v298, %v1471
    %v1473 = vpop.f32.mrb[0].mxu0
    %1474 = vmatprep.mubr.bf16.mxu0 0
    %1475 = vmatmul.mubr.bf16.gmra.mrb[0].mxu0 %v1409
    %v1476 = vpop.f32.mrb[0].mxu0
    %v1477 = vadd.f32 %v298, %v1476
    %v1478 = vpop.f32.mrb[0].mxu0
    %v1479 = vpop.f32.mrb[0].mxu0
    %v1480 = vadd.f32 %v298, %v1479
    %v1481 = vpop.f32.mrb[0].mxu0
    %1482 = vmatprep.mubr.bf16.mxu0 0
    %1483 = vmatmul.mubr.bf16.gmra.mrb[0].mxu0 %v1412
    %v1484 = vpop.f32.mrb[0].mxu0
    %v1485 = vadd.f32 %v298, %v1484
    %v1486 = vpop.f32.mrb[0].mxu0
    %v1487 = vpop.f32.mrb[0].mxu0
    %v1488 = vadd.f32 %v298, %v1487
    %v1489 = vpop.f32.mrb[0].mxu0
    %1490 = vmatprep.mubr.bf16.mxu0 0
    %1491 = vmatmul.mubr.bf16.gmra.mrb[0].mxu0 %v1415
    %v1492 = vpop.f32.mrb[0].mxu0
    %v1493 = vadd.f32 %v298, %v1492
    %v1494 = vpop.f32.mrb[0].mxu0
    %v1495 = vpop.f32.mrb[0].mxu0
    %v1496 = vadd.f32 %v298, %v1495
    %v1497 = vpop.f32.mrb[0].mxu0
    %1498 = vmatprep.mubr.bf16.mxu0 0
    %1499 = vmatmul.mubr.bf16.gmra.mrb[0].mxu0 %v1418
    %v1500 = vpop.f32.mrb[0].mxu0
    %v1501 = vadd.f32 %v298, %v1500
    %v1502 = vpop.f32.mrb[0].mxu0
    %v1503 = vpop.f32.mrb[0].mxu0
    %v1504 = vadd.f32 %v298, %v1503
    %v1505 = vpop.f32.mrb[0].mxu0
    %1506 = vmatprep.mubr.bf16.mxu0 0
    %1507 = vmatmul.mubr.bf16.gmra.mrb[0].mxu0 %v1421
    %v1508 = vpop.f32.mrb[0].mxu0
    %v1509 = vadd.f32 %v298, %v1508
    %v1510 = vpop.f32.mrb[0].mxu0
    %v1511 = vpop.f32.mrb[0].mxu0
    %v1512 = vadd.f32 %v298, %v1511
    %v1513 = vpop.f32.mrb[0].mxu0
    %1514 = vmatprep.mubr.bf16.mxu0 0
    %1515 = vmatmul.mubr.bf16.gmra.mrb[0].mxu0 %v1424
    %v1516 = vpop.f32.mrb[0].mxu0
    %v1517 = vadd.f32 %v298, %v1516
    %v1518 = vpop.f32.mrb[0].mxu0
    %v1519 = vpop.f32.mrb[0].mxu0
    %v1520 = vadd.f32 %v298, %v1519
    %v1521 = vpop.f32.mrb[0].mxu0
    %1522 = vdwg.mxu0
    %v1523 = vmax.f32 %v1461, 0.0
    %v1524 = vmax.f32 %v1464, 0.0
    %v1525 = vmax.f32 %v1469, 0.0
    %v1526 = vmax.f32 %v1472, 0.0
    %v1527 = vmax.f32 %v1477, 0.0
    %v1528 = vmax.f32 %v1480, 0.0
    %v1529 = vmax.f32 %v1485, 0.0
    %v1530 = vmax.f32 %v1488, 0.0
    %v1531 = vmax.f32 %v1493, 0.0
    %v1532 = vmax.f32 %v1496, 0.0
    %v1533 = vmax.f32 %v1501, 0.0
    %v1534 = vmax.f32 %v1504, 0.0
    %v1535 = vmax.f32 %v1509, 0.0
    %v1536 = vmax.f32 %v1512, 0.0
    %v1537 = vmax.f32 %v1517, 0.0
    %v1538 = vmax.f32 %v1520, 0.0
    %v1539 = vpack.c.bf16 %v1524, %v1523
    %v1540 = vpack.c.bf16 %v1526, %v1525
    %v1541 = vpack.c.bf16 %v1528, %v1527
    %v1542 = vpack.c.bf16 %v1530, %v1529
    %v1543 = vpack.c.bf16 %v1532, %v1531
    %v1544 = vpack.c.bf16 %v1534, %v1533
    %v1545 = vpack.c.bf16 %v1536, %v1535
    %v1546 = vpack.c.bf16 %v1538, %v1537
    %v1548 = vsel %vm324, %v1539, 0
    %v1551 = vsel %vm324, %v1540, 0
    %v1554 = vsel %vm324, %v1541, 0
    %v1557 = vsel %vm324, %v1542, 0
    %v1560 = vsel %vm324, %v1543, 0
    %v1563 = vsel %vm324, %v1544, 0
    %v1566 = vsel %vm324, %v1545, 0
    %v1569 = vsel %vm324, %v1546, 0
    %1571 = vmatprep.subr.bf16.mxu0 0
    %1572 = vmatpush1.bf16.msra.mxu0 %v492
    %1573 = vmatprep.subr.bf16.mxu0 0
    %1574 = vmatpush1.bf16.msra.mxu0 %v493
    %1575 = vmatprep.subr.bf16.mxu0 0
    %1576 = vmatpush1.bf16.msra.mxu0 %v494
    %1577 = vmatprep.subr.bf16.mxu0 0
    %1578 = vmatpush1.bf16.msra.mxu0 %v495
    %1579 = vmatprep.subr.bf16.mxu0 0
    %1580 = vmatpush1.bf16.msra.mxu0 0
    %1581 = vmatprep.subr.bf16.mxu0 0
    %1582 = vmatpush1.bf16.msra.mxu0 0
    %1583 = vmatprep.subr.bf16.mxu0 0
    %1584 = vmatpush1.bf16.msra.mxu0 0
    %1585 = vmatprep.subr.bf16.mxu0 0
    %1586 = vmatpush1.bf16.msra.mxu0 0
    %1587 = vmatprep.subr.bf16.mxu0 0
    %1588 = vmatpush1.bf16.msra.mxu0 0
    %1589 = vmatprep.subr.bf16.mxu0 0
    %1590 = vmatpush1.bf16.msra.mxu0 0
    %1591 = vmatprep.subr.bf16.mxu0 0
    %1592 = vmatpush1.bf16.msra.mxu0 0
    %1593 = vmatprep.subr.bf16.mxu0 0
    %1594 = vmatpush1.bf16.msra.mxu0 0
    %1595 = vmatprep.subr.bf16.mxu0 0
    %1596 = vmatpush1.bf16.msra.mxu0 0
    %1597 = vmatprep.subr.bf16.mxu0 0
    %1598 = vmatpush1.bf16.msra.mxu0 0
    %1599 = vmatprep.subr.bf16.mxu0 0
    %1600 = vmatpush1.bf16.msra.mxu0 0
    %1601 = vmatprep.subr.bf16.mxu0 0
    %1602 = vmatpush1.bf16.msra.mxu0 0
    %1603 = vmatprep.mubr.bf16.mxu0 0
    %1604 = vmatmul.mubr.bf16.gmra.mrb[0].mxu0 %v1548
    %v1605 = vpop.f32.mrb[0].mxu0
    %v1606 = vadd.f32 %v474, %v1605
    %v1607 = vpop.f32.mrb[0].mxu0
    %v1608 = vpop.f32.mrb[0].mxu0
    %v1609 = vadd.f32 %v474, %v1608
    %v1610 = vpop.f32.mrb[0].mxu0
    %1611 = vmatprep.mubr.bf16.mxu0 0
    %1612 = vmatmul.mubr.bf16.gmra.mrb[0].mxu0 %v1551
    %v1613 = vpop.f32.mrb[0].mxu0
    %v1614 = vadd.f32 %v474, %v1613
    %v1615 = vpop.f32.mrb[0].mxu0
    %v1616 = vpop.f32.mrb[0].mxu0
    %v1617 = vadd.f32 %v474, %v1616
    %v1618 = vpop.f32.mrb[0].mxu0
    %1619 = vmatprep.mubr.bf16.mxu0 0
    %1620 = vmatmul.mubr.bf16.gmra.mrb[0].mxu0 %v1554
    %v1621 = vpop.f32.mrb[0].mxu0
    %v1622 = vadd.f32 %v474, %v1621
    %v1623 = vpop.f32.mrb[0].mxu0
    %v1624 = vpop.f32.mrb[0].mxu0
    %v1625 = vadd.f32 %v474, %v1624
    %v1626 = vpop.f32.mrb[0].mxu0
    %1627 = vmatprep.mubr.bf16.mxu0 0
    %1628 = vmatmul.mubr.bf16.gmra.mrb[0].mxu0 %v1557
    %v1629 = vpop.f32.mrb[0].mxu0
    %v1630 = vadd.f32 %v474, %v1629
    %v1631 = vpop.f32.mrb[0].mxu0
    %v1632 = vpop.f32.mrb[0].mxu0
    %v1633 = vadd.f32 %v474, %v1632
    %v1634 = vpop.f32.mrb[0].mxu0
    %1635 = vmatprep.mubr.bf16.mxu0 0
    %1636 = vmatmul.mubr.bf16.gmra.mrb[0].mxu0 %v1560
    %v1637 = vpop.f32.mrb[0].mxu0
    %v1638 = vadd.f32 %v474, %v1637
    %v1639 = vpop.f32.mrb[0].mxu0
    %v1640 = vpop.f32.mrb[0].mxu0
    %v1641 = vadd.f32 %v474, %v1640
    %v1642 = vpop.f32.mrb[0].mxu0
    %1643 = vmatprep.mubr.bf16.mxu0 0
    %1644 = vmatmul.mubr.bf16.gmra.mrb[0].mxu0 %v1563
    %v1645 = vpop.f32.mrb[0].mxu0
    %v1646 = vadd.f32 %v474, %v1645
    %v1647 = vpop.f32.mrb[0].mxu0
    %v1648 = vpop.f32.mrb[0].mxu0
    %v1649 = vadd.f32 %v474, %v1648
    %v1650 = vpop.f32.mrb[0].mxu0
    %1651 = vmatprep.mubr.bf16.mxu0 0
    %1652 = vmatmul.mubr.bf16.gmra.mrb[0].mxu0 %v1566
    %v1653 = vpop.f32.mrb[0].mxu0
    %v1654 = vadd.f32 %v474, %v1653
    %v1655 = vpop.f32.mrb[0].mxu0
    %v1656 = vpop.f32.mrb[0].mxu0
    %v1657 = vadd.f32 %v474, %v1656
    %v1658 = vpop.f32.mrb[0].mxu0
    %1659 = vmatprep.mubr.bf16.mxu0 0
    %1660 = vmatmul.mubr.bf16.gmra.mrb[0].mxu0 %v1569
    %v1661 = vpop.f32.mrb[0].mxu0
    %v1662 = vadd.f32 %v474, %v1661
    %v1663 = vpop.f32.mrb[0].mxu0
    %v1664 = vpop.f32.mrb[0].mxu0
    %v1665 = vadd.f32 %v474, %v1664
    %v1666 = vpop.f32.mrb[0].mxu0
    %1667 = vdwg.mxu0
    %v1668 = vmax.f32 %v1606, 0.0
    %v1669 = vmax.f32 %v1609, 0.0
    %v1670 = vmax.f32 %v1614, 0.0
    %v1671 = vmax.f32 %v1617, 0.0
    %v1672 = vmax.f32 %v1622, 0.0
    %v1673 = vmax.f32 %v1625, 0.0
    %v1674 = vmax.f32 %v1630, 0.0
    %v1675 = vmax.f32 %v1633, 0.0
    %v1676 = vmax.f32 %v1638, 0.0
    %v1677 = vmax.f32 %v1641, 0.0
    %v1678 = vmax.f32 %v1646, 0.0
    %v1679 = vmax.f32 %v1649, 0.0
    %v1680 = vmax.f32 %v1654, 0.0
    %v1681 = vmax.f32 %v1657, 0.0
    %v1682 = vmax.f32 %v1662, 0.0
    %v1683 = vmax.f32 %v1665, 0.0
    %v1684 = vmul.f32 %v1668, %v641
    %v1685 = vmul.f32 %v1669, %v641
    %v1686 = vmul.f32 %v1670, %v641
    %v1687 = vmul.f32 %v1671, %v641
    %v1688 = vmul.f32 %v1672, %v641
    %v1689 = vmul.f32 %v1673, %v641
    %v1690 = vmul.f32 %v1674, %v641
    %v1691 = vmul.f32 %v1675, %v641
    %v1692 = vmul.f32 %v1676, %v641
    %v1693 = vmul.f32 %v1677, %v641
    %v1694 = vmul.f32 %v1678, %v641
    %v1695 = vmul.f32 %v1679, %v641
    %v1696 = vmul.f32 %v1680, %v641
    %v1697 = vmul.f32 %v1681, %v641
    %v1698 = vmul.f32 %v1682, %v641
    %v1699 = vmul.f32 %v1683, %v641
    %v1700 = vsel %vm324, %v1684, 0.0
    %1701 = vadd.xlane.f32.xlu0 %v1700
    %v1702 = vpop.xlane.xlu0 %1701
    %v1703 = vsel %vm324, %v1685, 0.0
    %1704 = vadd.xlane.f32.xlu0 %v1703
    %v1705 = vpop.xlane.xlu0 %1704
    %v1706 = vsel %vm324, %v1686, 0.0
    %1707 = vadd.xlane.f32.xlu0 %v1706
    %v1708 = vpop.xlane.xlu0 %1707
    %v1709 = vsel %vm324, %v1687, 0.0
    %1710 = vadd.xlane.f32.xlu0 %v1709
    %v1711 = vpop.xlane.xlu0 %1710
    %v1712 = vsel %vm324, %v1688, 0.0
    %1713 = vadd.xlane.f32.xlu0 %v1712
    %v1714 = vpop.xlane.xlu0 %1713
    %v1715 = vsel %vm324, %v1689, 0.0
    %1716 = vadd.xlane.f32.xlu0 %v1715
    %v1717 = vpop.xlane.xlu0 %1716
    %v1718 = vsel %vm324, %v1690, 0.0
    %1719 = vadd.xlane.f32.xlu0 %v1718
    %v1720 = vpop.xlane.xlu0 %1719
    %v1721 = vsel %vm324, %v1691, 0.0
    %1722 = vadd.xlane.f32.xlu0 %v1721
    %v1723 = vpop.xlane.xlu0 %1722
    %v1724 = vsel %vm324, %v1692, 0.0
    %1725 = vadd.xlane.f32.xlu0 %v1724
    %v1726 = vpop.xlane.xlu0 %1725
    %v1727 = vsel %vm324, %v1693, 0.0
    %1728 = vadd.xlane.f32.xlu0 %v1727
    %v1729 = vpop.xlane.xlu0 %1728
    %v1730 = vsel %vm324, %v1694, 0.0
    %1731 = vadd.xlane.f32.xlu0 %v1730
    %v1732 = vpop.xlane.xlu0 %1731
    %v1733 = vsel %vm324, %v1695, 0.0
    %1734 = vadd.xlane.f32.xlu0 %v1733
    %v1735 = vpop.xlane.xlu0 %1734
    %v1736 = vsel %vm324, %v1696, 0.0
    %1737 = vadd.xlane.f32.xlu0 %v1736
    %v1738 = vpop.xlane.xlu0 %1737
    %v1739 = vsel %vm324, %v1697, 0.0
    %1740 = vadd.xlane.f32.xlu0 %v1739
    %v1741 = vpop.xlane.xlu0 %1740
    %v1742 = vsel %vm324, %v1698, 0.0
    %1743 = vadd.xlane.f32.xlu0 %v1742
    %v1744 = vpop.xlane.xlu0 %1743
    %v1745 = vsel %vm324, %v1699, 0.0
    %1746 = vadd.xlane.f32.xlu0 %v1745
    %v1747 = vpop.xlane.xlu0 %1746
    %v1748 = vadd.f32 %v1702, %v707
    %v1749 = vadd.f32 %v1705, %v707
    %v1750 = vadd.f32 %v1708, %v707
    %v1751 = vadd.f32 %v1711, %v707
    %v1752 = vadd.f32 %v1714, %v707
    %v1753 = vadd.f32 %v1717, %v707
    %v1754 = vadd.f32 %v1720, %v707
    %v1755 = vadd.f32 %v1723, %v707
    %v1756 = vadd.f32 %v1726, %v707
    %v1757 = vadd.f32 %v1729, %v707
    %v1758 = vadd.f32 %v1732, %v707
    %v1759 = vadd.f32 %v1735, %v707
    %v1760 = vadd.f32 %v1738, %v707
    %v1761 = vadd.f32 %v1741, %v707
    %v1762 = vadd.f32 %v1744, %v707
    %v1763 = vadd.f32 %v1747, %v707
    %v1780 = vlaneseq
    %v1781 = vshrl.u32 %v1780, 7
    %v1782 = vsub.s32 %v741, %v1781
    %v1783 = vrot.slane %v1748, %v1782
    %v1784 = vlaneseq
    %v1785 = vshrl.u32 %v1784, 7
    %v1786 = vsub.s32 %v746, %v1785
    %v1787 = vrot.slane %v1749, %v1786
    %v1788 = vsel %vm751, %v1787, %v1783
    %v1789 = vlaneseq
    %v1790 = vshrl.u32 %v1789, 7
    %v1791 = vsub.s32 %v753, %v1790
    %v1792 = vrot.slane %v1750, %v1791
    %v1793 = vsel %vm758, %v1792, %v1788
    %v1794 = vlaneseq
    %v1795 = vshrl.u32 %v1794, 7
    %v1796 = vsub.s32 %v760, %v1795
    %v1797 = vrot.slane %v1751, %v1796
    %v1798 = vsel %vm765, %v1797, %v1793
    %v1799 = vlaneseq
    %v1800 = vshrl.u32 %v1799, 7
    %v1801 = vsub.s32 %v767, %v1800
    %v1802 = vrot.slane %v1752, %v1801
    %v1803 = vsel %vm772, %v1802, %v1798
    %v1804 = vlaneseq
    %v1805 = vshrl.u32 %v1804, 7
    %v1806 = vsub.s32 %v774, %v1805
    %v1807 = vrot.slane %v1753, %v1806
    %v1808 = vsel %vm779, %v1807, %v1803
    %v1809 = vlaneseq
    %v1810 = vshrl.u32 %v1809, 7
    %v1811 = vsub.s32 %v781, %v1810
    %v1812 = vrot.slane %v1754, %v1811
    %v1813 = vsel %vm786, %v1812, %v1808
    %v1814 = vlaneseq
    %v1815 = vshrl.u32 %v1814, 7
    %v1816 = vsub.s32 %v788, %v1815
    %v1817 = vrot.slane %v1755, %v1816
    %v1818 = vsel %vm793, %v1817, %v1813
    %v1819 = vlaneseq
    %v1820 = vshrl.u32 %v1819, 7
    %v1821 = vsub.s32 %v795, %v1820
    %v1822 = vrot.slane %v1756, %v1821
    %v1823 = vsel %vm800, %v1822, %v1818
    %v1824 = vlaneseq
    %v1825 = vshrl.u32 %v1824, 7
    %v1826 = vsub.s32 %v802, %v1825
    %v1827 = vrot.slane %v1757, %v1826
    %v1828 = vsel %vm807, %v1827, %v1823
    %v1829 = vlaneseq
    %v1830 = vshrl.u32 %v1829, 7
    %v1831 = vsub.s32 %v809, %v1830
    %v1832 = vrot.slane %v1758, %v1831
    %v1833 = vsel %vm814, %v1832, %v1828
    %v1834 = vlaneseq
    %v1835 = vshrl.u32 %v1834, 7
    %v1836 = vsub.s32 %v816, %v1835
    %v1837 = vrot.slane %v1759, %v1836
    %v1838 = vsel %vm821, %v1837, %v1833
    %v1839 = vlaneseq
    %v1840 = vshrl.u32 %v1839, 7
    %v1841 = vsub.s32 %v823, %v1840
    %v1842 = vrot.slane %v1760, %v1841
    %v1843 = vsel %vm828, %v1842, %v1838
    %v1844 = vlaneseq
    %v1845 = vshrl.u32 %v1844, 7
    %v1846 = vsub.s32 %v830, %v1845
    %v1847 = vrot.slane %v1761, %v1846
    %v1848 = vsel %vm835, %v1847, %v1843
    %v1849 = vlaneseq
    %v1850 = vshrl.u32 %v1849, 7
    %v1851 = vsub.s32 %v837, %v1850
    %v1852 = vrot.slane %v1762, %v1851
    %v1853 = vsel %vm842, %v1852, %v1848
    %v1854 = vlaneseq
    %v1855 = vshrl.u32 %v1854, 7
    %v1856 = vsub.s32 %v844, %v1855
    %v1857 = vrot.slane %v1763, %v1856
    %v1858 = vsel %vm849, %v1857, %v1853
    %1860 = vst [vmem:[#allocation3 + $0x2] sm:$0x1] %v1858
    %v1861 = vld [vmem:[%s1 + $0x3] sm:$0x1]
    %v1862 = vlaneseq
    %v1863 = vshrl.u32 %v1862, 7
    %v1864 = vsub.s32 0, %v1863
    %v1865 = vrot.slane %v1861, %v1864
    %v1866 = vadd.f32 %v167, %v1865
    %v1867 = vadd.f32 %v170, %v1865
    %v1868 = vadd.f32 %v175, %v1865
    %v1869 = vadd.f32 %v178, %v1865
    %v1870 = vadd.f32 %v183, %v1865
    %v1871 = vadd.f32 %v186, %v1865
    %v1872 = vadd.f32 %v191, %v1865
    %v1873 = vadd.f32 %v194, %v1865
    %v1874 = vadd.f32 %v199, %v1865
    %v1875 = vadd.f32 %v202, %v1865
    %v1876 = vadd.f32 %v207, %v1865
    %v1877 = vadd.f32 %v210, %v1865
    %v1878 = vadd.f32 %v215, %v1865
    %v1879 = vadd.f32 %v218, %v1865
    %v1880 = vadd.f32 %v223, %v1865
    %v1881 = vadd.f32 %v226, %v1865
    %v1882 = vmax.f32 %v1866, 0.0
    %v1883 = vmax.f32 %v1867, 0.0
    %v1884 = vmax.f32 %v1868, 0.0
    %v1885 = vmax.f32 %v1869, 0.0
    %v1886 = vmax.f32 %v1870, 0.0
    %v1887 = vmax.f32 %v1871, 0.0
    %v1888 = vmax.f32 %v1872, 0.0
    %v1889 = vmax.f32 %v1873, 0.0
    %v1890 = vmax.f32 %v1874, 0.0
    %v1891 = vmax.f32 %v1875, 0.0
    %v1892 = vmax.f32 %v1876, 0.0
    %v1893 = vmax.f32 %v1877, 0.0
    %v1894 = vmax.f32 %v1878, 0.0
    %v1895 = vmax.f32 %v1879, 0.0
    %v1896 = vmax.f32 %v1880, 0.0
    %v1897 = vmax.f32 %v1881, 0.0
    %v1898 = vpack.c.bf16 %v1883, %v1882
    %v1899 = vpack.c.bf16 %v1885, %v1884
    %v1900 = vpack.c.bf16 %v1887, %v1886
    %v1901 = vpack.c.bf16 %v1889, %v1888
    %v1902 = vpack.c.bf16 %v1891, %v1890
    %v1903 = vpack.c.bf16 %v1893, %v1892
    %v1904 = vpack.c.bf16 %v1895, %v1894
    %v1905 = vpack.c.bf16 %v1897, %v1896
    %v1907 = vsel %vm324, %v1898, 0
    %v1910 = vsel %vm324, %v1899, 0
    %v1913 = vsel %vm324, %v1900, 0
    %v1916 = vsel %vm324, %v1901, 0
    %v1919 = vsel %vm324, %v1902, 0
    %v1922 = vsel %vm324, %v1903, 0
    %v1925 = vsel %vm324, %v1904, 0
    %v1928 = vsel %vm324, %v1905, 0
    %1930 = vmatprep.subr.bf16.mxu0 0
    %1931 = vmatpush1.bf16.msra.mxu0 %v316
    %1932 = vmatprep.subr.bf16.mxu0 0
    %1933 = vmatpush1.bf16.msra.mxu0 %v317
    %1934 = vmatprep.subr.bf16.mxu0 0
    %1935 = vmatpush1.bf16.msra.mxu0 %v318
    %1936 = vmatprep.subr.bf16.mxu0 0
    %1937 = vmatpush1.bf16.msra.mxu0 %v319
    %1938 = vmatprep.subr.bf16.mxu0 0
    %1939 = vmatpush1.bf16.msra.mxu0 0
    %1940 = vmatprep.subr.bf16.mxu0 0
    %1941 = vmatpush1.bf16.msra.mxu0 0
    %1942 = vmatprep.subr.bf16.mxu0 0
    %1943 = vmatpush1.bf16.msra.mxu0 0
    %1944 = vmatprep.subr.bf16.mxu0 0
    %1945 = vmatpush1.bf16.msra.mxu0 0
    %1946 = vmatprep.subr.bf16.mxu0 0
    %1947 = vmatpush1.bf16.msra.mxu0 0
    %1948 = vmatprep.subr.bf16.mxu0 0
    %1949 = vmatpush1.bf16.msra.mxu0 0
    %1950 = vmatprep.subr.bf16.mxu0 0
    %1951 = vmatpush1.bf16.msra.mxu0 0
    %1952 = vmatprep.subr.bf16.mxu0 0
    %1953 = vmatpush1.bf16.msra.mxu0 0
    %1954 = vmatprep.subr.bf16.mxu0 0
    %1955 = vmatpush1.bf16.msra.mxu0 0
    %1956 = vmatprep.subr.bf16.mxu0 0
    %1957 = vmatpush1.bf16.msra.mxu0 0
    %1958 = vmatprep.subr.bf16.mxu0 0
    %1959 = vmatpush1.bf16.msra.mxu0 0
    %1960 = vmatprep.subr.bf16.mxu0 0
    %1961 = vmatpush1.bf16.msra.mxu0 0
    %1962 = vmatprep.mubr.bf16.mxu0 0
    %1963 = vmatmul.mubr.bf16.gmra.mrb[0].mxu0 %v1907
    %v1964 = vpop.f32.mrb[0].mxu0
    %v1965 = vadd.f32 %v298, %v1964
    %v1966 = vpop.f32.mrb[0].mxu0
    %v1967 = vpop.f32.mrb[0].mxu0
    %v1968 = vadd.f32 %v298, %v1967
    %v1969 = vpop.f32.mrb[0].mxu0
    %1970 = vmatprep.mubr.bf16.mxu0 0
    %1971 = vmatmul.mubr.bf16.gmra.mrb[0].mxu0 %v1910
    %v1972 = vpop.f32.mrb[0].mxu0
    %v1973 = vadd.f32 %v298, %v1972
    %v1974 = vpop.f32.mrb[0].mxu0
    %v1975 = vpop.f32.mrb[0].mxu0
    %v1976 = vadd.f32 %v298, %v1975
    %v1977 = vpop.f32.mrb[0].mxu0
    %1978 = vmatprep.mubr.bf16.mxu0 0
    %1979 = vmatmul.mubr.bf16.gmra.mrb[0].mxu0 %v1913
    %v1980 = vpop.f32.mrb[0].mxu0
    %v1981 = vadd.f32 %v298, %v1980
    %v1982 = vpop.f32.mrb[0].mxu0
    %v1983 = vpop.f32.mrb[0].mxu0
    %v1984 = vadd.f32 %v298, %v1983
    %v1985 = vpop.f32.mrb[0].mxu0
    %1986 = vmatprep.mubr.bf16.mxu0 0
    %1987 = vmatmul.mubr.bf16.gmra.mrb[0].mxu0 %v1916
    %v1988 = vpop.f32.mrb[0].mxu0
    %v1989 = vadd.f32 %v298, %v1988
    %v1990 = vpop.f32.mrb[0].mxu0
    %v1991 = vpop.f32.mrb[0].mxu0
    %v1992 = vadd.f32 %v298, %v1991
    %v1993 = vpop.f32.mrb[0].mxu0
    %1994 = vmatprep.mubr.bf16.mxu0 0
    %1995 = vmatmul.mubr.bf16.gmra.mrb[0].mxu0 %v1919
    %v1996 = vpop.f32.mrb[0].mxu0
    %v1997 = vadd.f32 %v298, %v1996
    %v1998 = vpop.f32.mrb[0].mxu0
    %v1999 = vpop.f32.mrb[0].mxu0
    %v2000 = vadd.f32 %v298, %v1999
    %v2001 = vpop.f32.mrb[0].mxu0
    %2002 = vmatprep.mubr.bf16.mxu0 0
    %2003 = vmatmul.mubr.bf16.gmra.mrb[0].mxu0 %v1922
    %v2004 = vpop.f32.mrb[0].mxu0
    %v2005 = vadd.f32 %v298, %v2004
    %v2006 = vpop.f32.mrb[0].mxu0
    %v2007 = vpop.f32.mrb[0].mxu0
    %v2008 = vadd.f32 %v298, %v2007
    %v2009 = vpop.f32.mrb[0].mxu0
    %2010 = vmatprep.mubr.bf16.mxu0 0
    %2011 = vmatmul.mubr.bf16.gmra.mrb[0].mxu0 %v1925
    %v2012 = vpop.f32.mrb[0].mxu0
    %v2013 = vadd.f32 %v298, %v2012
    %v2014 = vpop.f32.mrb[0].mxu0
    %v2015 = vpop.f32.mrb[0].mxu0
    %v2016 = vadd.f32 %v298, %v2015
    %v2017 = vpop.f32.mrb[0].mxu0
    %2018 = vmatprep.mubr.bf16.mxu0 0
    %2019 = vmatmul.mubr.bf16.gmra.mrb[0].mxu0 %v1928
    %v2020 = vpop.f32.mrb[0].mxu0
    %v2021 = vadd.f32 %v298, %v2020
    %v2022 = vpop.f32.mrb[0].mxu0
    %v2023 = vpop.f32.mrb[0].mxu0
    %v2024 = vadd.f32 %v298, %v2023
    %v2025 = vpop.f32.mrb[0].mxu0
    %2026 = vdwg.mxu0
    %v2027 = vmax.f32 %v1965, 0.0
    %v2028 = vmax.f32 %v1968, 0.0
    %v2029 = vmax.f32 %v1973, 0.0
    %v2030 = vmax.f32 %v1976, 0.0
    %v2031 = vmax.f32 %v1981, 0.0
    %v2032 = vmax.f32 %v1984, 0.0
    %v2033 = vmax.f32 %v1989, 0.0
    %v2034 = vmax.f32 %v1992, 0.0
    %v2035 = vmax.f32 %v1997, 0.0
    %v2036 = vmax.f32 %v2000, 0.0
    %v2037 = vmax.f32 %v2005, 0.0
    %v2038 = vmax.f32 %v2008, 0.0
    %v2039 = vmax.f32 %v2013, 0.0
    %v2040 = vmax.f32 %v2016, 0.0
    %v2041 = vmax.f32 %v2021, 0.0
    %v2042 = vmax.f32 %v2024, 0.0
    %v2043 = vpack.c.bf16 %v2028, %v2027
    %v2044 = vpack.c.bf16 %v2030, %v2029
    %v2045 = vpack.c.bf16 %v2032, %v2031
    %v2046 = vpack.c.bf16 %v2034, %v2033
    %v2047 = vpack.c.bf16 %v2036, %v2035
    %v2048 = vpack.c.bf16 %v2038, %v2037
    %v2049 = vpack.c.bf16 %v2040, %v2039
    %v2050 = vpack.c.bf16 %v2042, %v2041
    %v2052 = vsel %vm324, %v2043, 0
    %v2055 = vsel %vm324, %v2044, 0
    %v2058 = vsel %vm324, %v2045, 0
    %v2061 = vsel %vm324, %v2046, 0
    %v2064 = vsel %vm324, %v2047, 0
    %v2067 = vsel %vm324, %v2048, 0
    %v2070 = vsel %vm324, %v2049, 0
    %v2073 = vsel %vm324, %v2050, 0
    %2075 = vmatprep.subr.bf16.mxu0 0
    %2076 = vmatpush1.bf16.msra.mxu0 %v492
    %2077 = vmatprep.subr.bf16.mxu0 0
    %2078 = vmatpush1.bf16.msra.mxu0 %v493
    %2079 = vmatprep.subr.bf16.mxu0 0
    %2080 = vmatpush1.bf16.msra.mxu0 %v494
    %2081 = vmatprep.subr.bf16.mxu0 0
    %2082 = vmatpush1.bf16.msra.mxu0 %v495
    %2083 = vmatprep.subr.bf16.mxu0 0
    %2084 = vmatpush1.bf16.msra.mxu0 0
    %2085 = vmatprep.subr.bf16.mxu0 0
    %2086 = vmatpush1.bf16.msra.mxu0 0
    %2087 = vmatprep.subr.bf16.mxu0 0
    %2088 = vmatpush1.bf16.msra.mxu0 0
    %2089 = vmatprep.subr.bf16.mxu0 0
    %2090 = vmatpush1.bf16.msra.mxu0 0
    %2091 = vmatprep.subr.bf16.mxu0 0
    %2092 = vmatpush1.bf16.msra.mxu0 0
    %2093 = vmatprep.subr.bf16.mxu0 0
    %2094 = vmatpush1.bf16.msra.mxu0 0
    %2095 = vmatprep.subr.bf16.mxu0 0
    %2096 = vmatpush1.bf16.msra.mxu0 0
    %2097 = vmatprep.subr.bf16.mxu0 0
    %2098 = vmatpush1.bf16.msra.mxu0 0
    %2099 = vmatprep.subr.bf16.mxu0 0
    %2100 = vmatpush1.bf16.msra.mxu0 0
    %2101 = vmatprep.subr.bf16.mxu0 0
    %2102 = vmatpush1.bf16.msra.mxu0 0
    %2103 = vmatprep.subr.bf16.mxu0 0
    %2104 = vmatpush1.bf16.msra.mxu0 0
    %2105 = vmatprep.subr.bf16.mxu0 0
    %2106 = vmatpush1.bf16.msra.mxu0 0
    %2107 = vmatprep.mubr.bf16.mxu0 0
    %2108 = vmatmul.mubr.bf16.gmra.mrb[0].mxu0 %v2052
    %v2109 = vpop.f32.mrb[0].mxu0
    %v2110 = vadd.f32 %v474, %v2109
    %v2111 = vpop.f32.mrb[0].mxu0
    %v2112 = vpop.f32.mrb[0].mxu0
    %v2113 = vadd.f32 %v474, %v2112
    %v2114 = vpop.f32.mrb[0].mxu0
    %2115 = vmatprep.mubr.bf16.mxu0 0
    %2116 = vmatmul.mubr.bf16.gmra.mrb[0].mxu0 %v2055
    %v2117 = vpop.f32.mrb[0].mxu0
    %v2118 = vadd.f32 %v474, %v2117
    %v2119 = vpop.f32.mrb[0].mxu0
    %v2120 = vpop.f32.mrb[0].mxu0
    %v2121 = vadd.f32 %v474, %v2120
    %v2122 = vpop.f32.mrb[0].mxu0
    %2123 = vmatprep.mubr.bf16.mxu0 0
    %2124 = vmatmul.mubr.bf16.gmra.mrb[0].mxu0 %v2058
    %v2125 = vpop.f32.mrb[0].mxu0
    %v2126 = vadd.f32 %v474, %v2125
    %v2127 = vpop.f32.mrb[0].mxu0
    %v2128 = vpop.f32.mrb[0].mxu0
    %v2129 = vadd.f32 %v474, %v2128
    %v2130 = vpop.f32.mrb[0].mxu0
    %2131 = vmatprep.mubr.bf16.mxu0 0
    %2132 = vmatmul.mubr.bf16.gmra.mrb[0].mxu0 %v2061
    %v2133 = vpop.f32.mrb[0].mxu0
    %v2134 = vadd.f32 %v474, %v2133
    %v2135 = vpop.f32.mrb[0].mxu0
    %v2136 = vpop.f32.mrb[0].mxu0
    %v2137 = vadd.f32 %v474, %v2136
    %v2138 = vpop.f32.mrb[0].mxu0
    %2139 = vmatprep.mubr.bf16.mxu0 0
    %2140 = vmatmul.mubr.bf16.gmra.mrb[0].mxu0 %v2064
    %v2141 = vpop.f32.mrb[0].mxu0
    %v2142 = vadd.f32 %v474, %v2141
    %v2143 = vpop.f32.mrb[0].mxu0
    %v2144 = vpop.f32.mrb[0].mxu0
    %v2145 = vadd.f32 %v474, %v2144
    %v2146 = vpop.f32.mrb[0].mxu0
    %2147 = vmatprep.mubr.bf16.mxu0 0
    %2148 = vmatmul.mubr.bf16.gmra.mrb[0].mxu0 %v2067
    %v2149 = vpop.f32.mrb[0].mxu0
    %v2150 = vadd.f32 %v474, %v2149
    %v2151 = vpop.f32.mrb[0].mxu0
    %v2152 = vpop.f32.mrb[0].mxu0
    %v2153 = vadd.f32 %v474, %v2152
    %v2154 = vpop.f32.mrb[0].mxu0
    %2155 = vmatprep.mubr.bf16.mxu0 0
    %2156 = vmatmul.mubr.bf16.gmra.mrb[0].mxu0 %v2070
    %v2157 = vpop.f32.mrb[0].mxu0
    %v2158 = vadd.f32 %v474, %v2157
    %v2159 = vpop.f32.mrb[0].mxu0
    %v2160 = vpop.f32.mrb[0].mxu0
    %v2161 = vadd.f32 %v474, %v2160
    %v2162 = vpop.f32.mrb[0].mxu0
    %2163 = vmatprep.mubr.bf16.mxu0 0
    %2164 = vmatmul.mubr.bf16.gmra.mrb[0].mxu0 %v2073
    %v2165 = vpop.f32.mrb[0].mxu0
    %v2166 = vadd.f32 %v474, %v2165
    %v2167 = vpop.f32.mrb[0].mxu0
    %v2168 = vpop.f32.mrb[0].mxu0
    %v2169 = vadd.f32 %v474, %v2168
    %v2170 = vpop.f32.mrb[0].mxu0
    %2171 = vdwg.mxu0
    %v2172 = vmax.f32 %v2110, 0.0
    %v2173 = vmax.f32 %v2113, 0.0
    %v2174 = vmax.f32 %v2118, 0.0
    %v2175 = vmax.f32 %v2121, 0.0
    %v2176 = vmax.f32 %v2126, 0.0
    %v2177 = vmax.f32 %v2129, 0.0
    %v2178 = vmax.f32 %v2134, 0.0
    %v2179 = vmax.f32 %v2137, 0.0
    %v2180 = vmax.f32 %v2142, 0.0
    %v2181 = vmax.f32 %v2145, 0.0
    %v2182 = vmax.f32 %v2150, 0.0
    %v2183 = vmax.f32 %v2153, 0.0
    %v2184 = vmax.f32 %v2158, 0.0
    %v2185 = vmax.f32 %v2161, 0.0
    %v2186 = vmax.f32 %v2166, 0.0
    %v2187 = vmax.f32 %v2169, 0.0
    %v2188 = vmul.f32 %v2172, %v641
    %v2189 = vmul.f32 %v2173, %v641
    %v2190 = vmul.f32 %v2174, %v641
    %v2191 = vmul.f32 %v2175, %v641
    %v2192 = vmul.f32 %v2176, %v641
    %v2193 = vmul.f32 %v2177, %v641
    %v2194 = vmul.f32 %v2178, %v641
    %v2195 = vmul.f32 %v2179, %v641
    %v2196 = vmul.f32 %v2180, %v641
    %v2197 = vmul.f32 %v2181, %v641
    %v2198 = vmul.f32 %v2182, %v641
    %v2199 = vmul.f32 %v2183, %v641
    %v2200 = vmul.f32 %v2184, %v641
    %v2201 = vmul.f32 %v2185, %v641
    %v2202 = vmul.f32 %v2186, %v641
    %v2203 = vmul.f32 %v2187, %v641
    %v2204 = vsel %vm324, %v2188, 0.0
    %2205 = vadd.xlane.f32.xlu0 %v2204
    %v2206 = vpop.xlane.xlu0 %2205
    %v2207 = vsel %vm324, %v2189, 0.0
    %2208 = vadd.xlane.f32.xlu0 %v2207
    %v2209 = vpop.xlane.xlu0 %2208
    %v2210 = vsel %vm324, %v2190, 0.0
    %2211 = vadd.xlane.f32.xlu0 %v2210
    %v2212 = vpop.xlane.xlu0 %2211
    %v2213 = vsel %vm324, %v2191, 0.0
    %2214 = vadd.xlane.f32.xlu0 %v2213
    %v2215 = vpop.xlane.xlu0 %2214
    %v2216 = vsel %vm324, %v2192, 0.0
    %2217 = vadd.xlane.f32.xlu0 %v2216
    %v2218 = vpop.xlane.xlu0 %2217
    %v2219 = vsel %vm324, %v2193, 0.0
    %2220 = vadd.xlane.f32.xlu0 %v2219
    %v2221 = vpop.xlane.xlu0 %2220
    %v2222 = vsel %vm324, %v2194, 0.0
    %2223 = vadd.xlane.f32.xlu0 %v2222
    %v2224 = vpop.xlane.xlu0 %2223
    %v2225 = vsel %vm324, %v2195, 0.0
    %2226 = vadd.xlane.f32.xlu0 %v2225
    %v2227 = vpop.xlane.xlu0 %2226
    %v2228 = vsel %vm324, %v2196, 0.0
    %2229 = vadd.xlane.f32.xlu0 %v2228
    %v2230 = vpop.xlane.xlu0 %2229
    %v2231 = vsel %vm324, %v2197, 0.0
    %2232 = vadd.xlane.f32.xlu0 %v2231
    %v2233 = vpop.xlane.xlu0 %2232
    %v2234 = vsel %vm324, %v2198, 0.0
    %2235 = vadd.xlane.f32.xlu0 %v2234
    %v2236 = vpop.xlane.xlu0 %2235
    %v2237 = vsel %vm324, %v2199, 0.0
    %2238 = vadd.xlane.f32.xlu0 %v2237
    %v2239 = vpop.xlane.xlu0 %2238
    %v2240 = vsel %vm324, %v2200, 0.0
    %2241 = vadd.xlane.f32.xlu0 %v2240
    %v2242 = vpop.xlane.xlu0 %2241
    %v2243 = vsel %vm324, %v2201, 0.0
    %2244 = vadd.xlane.f32.xlu0 %v2243
    %v2245 = vpop.xlane.xlu0 %2244
    %v2246 = vsel %vm324, %v2202, 0.0
    %2247 = vadd.xlane.f32.xlu0 %v2246
    %v2248 = vpop.xlane.xlu0 %2247
    %v2249 = vsel %vm324, %v2203, 0.0
    %2250 = vadd.xlane.f32.xlu0 %v2249
    %v2251 = vpop.xlane.xlu0 %2250
    %v2252 = vadd.f32 %v2206, %v707
    %v2253 = vadd.f32 %v2209, %v707
    %v2254 = vadd.f32 %v2212, %v707
    %v2255 = vadd.f32 %v2215, %v707
    %v2256 = vadd.f32 %v2218, %v707
    %v2257 = vadd.f32 %v2221, %v707
    %v2258 = vadd.f32 %v2224, %v707
    %v2259 = vadd.f32 %v2227, %v707
    %v2260 = vadd.f32 %v2230, %v707
    %v2261 = vadd.f32 %v2233, %v707
    %v2262 = vadd.f32 %v2236, %v707
    %v2263 = vadd.f32 %v2239, %v707
    %v2264 = vadd.f32 %v2242, %v707
    %v2265 = vadd.f32 %v2245, %v707
    %v2266 = vadd.f32 %v2248, %v707
    %v2267 = vadd.f32 %v2251, %v707
    %v2284 = vlaneseq
    %v2285 = vshrl.u32 %v2284, 7
    %v2286 = vsub.s32 %v741, %v2285
    %v2287 = vrot.slane %v2252, %v2286
    %v2288 = vlaneseq
    %v2289 = vshrl.u32 %v2288, 7
    %v2290 = vsub.s32 %v746, %v2289
    %v2291 = vrot.slane %v2253, %v2290
    %v2292 = vsel %vm751, %v2291, %v2287
    %v2293 = vlaneseq
    %v2294 = vshrl.u32 %v2293, 7
    %v2295 = vsub.s32 %v753, %v2294
    %v2296 = vrot.slane %v2254, %v2295
    %v2297 = vsel %vm758, %v2296, %v2292
    %v2298 = vlaneseq
    %v2299 = vshrl.u32 %v2298, 7
    %v2300 = vsub.s32 %v760, %v2299
    %v2301 = vrot.slane %v2255, %v2300
    %v2302 = vsel %vm765, %v2301, %v2297
    %v2303 = vlaneseq
    %v2304 = vshrl.u32 %v2303, 7
    %v2305 = vsub.s32 %v767, %v2304
    %v2306 = vrot.slane %v2256, %v2305
    %v2307 = vsel %vm772, %v2306, %v2302
    %v2308 = vlaneseq
    %v2309 = vshrl.u32 %v2308, 7
    %v2310 = vsub.s32 %v774, %v2309
    %v2311 = vrot.slane %v2257, %v2310
    %v2312 = vsel %vm779, %v2311, %v2307
    %v2313 = vlaneseq
    %v2314 = vshrl.u32 %v2313, 7
    %v2315 = vsub.s32 %v781, %v2314
    %v2316 = vrot.slane %v2258, %v2315
    %v2317 = vsel %vm786, %v2316, %v2312
    %v2318 = vlaneseq
    %v2319 = vshrl.u32 %v2318, 7
    %v2320 = vsub.s32 %v788, %v2319
    %v2321 = vrot.slane %v2259, %v2320
    %v2322 = vsel %vm793, %v2321, %v2317
    %v2323 = vlaneseq
    %v2324 = vshrl.u32 %v2323, 7
    %v2325 = vsub.s32 %v795, %v2324
    %v2326 = vrot.slane %v2260, %v2325
    %v2327 = vsel %vm800, %v2326, %v2322
    %v2328 = vlaneseq
    %v2329 = vshrl.u32 %v2328, 7
    %v2330 = vsub.s32 %v802, %v2329
    %v2331 = vrot.slane %v2261, %v2330
    %v2332 = vsel %vm807, %v2331, %v2327
    %v2333 = vlaneseq
    %v2334 = vshrl.u32 %v2333, 7
    %v2335 = vsub.s32 %v809, %v2334
    %v2336 = vrot.slane %v2262, %v2335
    %v2337 = vsel %vm814, %v2336, %v2332
    %v2338 = vlaneseq
    %v2339 = vshrl.u32 %v2338, 7
    %v2340 = vsub.s32 %v816, %v2339
    %v2341 = vrot.slane %v2263, %v2340
    %v2342 = vsel %vm821, %v2341, %v2337
    %v2343 = vlaneseq
    %v2344 = vshrl.u32 %v2343, 7
    %v2345 = vsub.s32 %v823, %v2344
    %v2346 = vrot.slane %v2264, %v2345
    %v2347 = vsel %vm828, %v2346, %v2342
    %v2348 = vlaneseq
    %v2349 = vshrl.u32 %v2348, 7
    %v2350 = vsub.s32 %v830, %v2349
    %v2351 = vrot.slane %v2265, %v2350
    %v2352 = vsel %vm835, %v2351, %v2347
    %v2353 = vlaneseq
    %v2354 = vshrl.u32 %v2353, 7
    %v2355 = vsub.s32 %v837, %v2354
    %v2356 = vrot.slane %v2266, %v2355
    %v2357 = vsel %vm842, %v2356, %v2352
    %v2358 = vlaneseq
    %v2359 = vshrl.u32 %v2358, 7
    %v2360 = vsub.s32 %v844, %v2359
    %v2361 = vrot.slane %v2267, %v2360
    %v2362 = vsel %vm849, %v2361, %v2357
    %2364 = vst [vmem:[#allocation3 + $0x3] sm:$0x1] %v2362
    // Predicated region
    $region38: #{tpu_custom_call.1} parent=1 // pred_check
      _
    $region39: #{tpu_custom_call.1} parent=1 // pred_check_branch
      %2366 = sbr.rel (0) target = $region41
    $region40: #{tpu_custom_call.1} parent=1 // pred_region
      %s2368 = ssub.s32 64, 64
      %2369 = vsyncadd [#allocation4], %s2368
      %s2371 = sshll.u32 [#allocation3], 4
      %s2372 = int_to_ptr.vmem [resolvable:$true] %s2371
      %2374 = dma.vmem_to_hbm [thread:$0]  %s2372, 64, %s9, [#allocation4]
    $region41: #{tpu_custom_call.1} parent=1 // pred_fallthru
      _
    // Predicated region
    $region42: #{tpu_custom_call.1} parent=1 // pred_check
      _
    $region43: #{tpu_custom_call.1} parent=1 // pred_check_branch
      %2376 = sbr.rel (0) target = $region45
    $region44: #{tpu_custom_call.1} parent=1 // pred_region
      %2377 = dma.done [#allocation4], 64
    $region45: #{tpu_custom_call.1} parent=1 // pred_fallthru
      _
    %2378 = vsyncpa [#allocation4], 1

</llo_original>
